<compile_context>
chip_gen: v7x
topology: tpu7x:2x2x1
jax: 0.10.0
libtpu: 0.0.40
codegen_flags: <defaults>
</compile_context>

<pallas_src>
import jax
import jax.numpy as jnp
from jax.experimental import pallas as pl
from jax.experimental.pallas import tpu as pltpu


# ----------------------------- Pallas kernels ------------------------------

def _gemm_prelu_kernel(a_ref, w_ref, alpha_ref, o_ref):
    """(tm,K) @ (K,N) -> PReLU.  N is a multiple of 128 (lane-dense stores)."""
    acc = jnp.dot(a_ref[...], w_ref[...], preferred_element_type=jnp.float32)
    alpha = alpha_ref[0]
    o_ref[...] = jnp.where(acc >= 0.0, acc, alpha * acc)


def _gemm_prelu_add_kernel(a_ref, w_ref, alpha_ref, r_ref, o_ref):
    """out = PReLU(a @ w) + r   (fused residual add, fp32 epilogue)."""
    acc = jnp.dot(a_ref[...], w_ref[...], preferred_element_type=jnp.float32)
    alpha = alpha_ref[0]
    y = jnp.where(acc >= 0.0, acc, alpha * acc)
    o_ref[...] = y + r_ref[...]


def _gemmT_bias_prelu_kernel(w_ref, p_ref, b_ref, alpha_ref, o_ref):
    """(Cout,K) @ (K,tn) + bias -> PReLU.  Channels on sublanes, pixels on lanes."""
    acc = jnp.dot(w_ref[...], p_ref[...], preferred_element_type=jnp.float32)
    acc = acc + b_ref[...]
    alpha = alpha_ref[0]
    o_ref[...] = jnp.where(acc >= 0.0, acc, alpha * acc)


def _gemmT_prelu_sub_kernel(w_ref, p_ref, alpha_ref, r_ref, o_ref):
    """out = PReLU(w @ p) - r   (no bias, fused residual subtract)."""
    acc = jnp.dot(w_ref[...], p_ref[...], preferred_element_type=jnp.float32)
    alpha = alpha_ref[0]
    y = jnp.where(acc >= 0.0, acc, alpha * acc)
    o_ref[...] = y - r_ref[...]


# ----------------------------- GEMM wrappers --------------------------------

def _pick_row_tile(m):
    if m >= 4096:
        return 512
    if m >= 1024:
        return 256
    return 128


def _pick_lane_tile(m):
    if m >= 4096 and m % 512 == 0:
        return 512
    for t in (256, 128):
        if m % t == 0:
            return t
    return m  # whole-array block (allowed: block == full dim)


def gemm_rows_prelu(a, w, alpha, residual=None, tm=None):
    """out = PReLU(a @ w) [+ residual].  a:(M,K), w:(K,N) with N % 128 == 0.

    Rows (pixels) on sublanes tiled by tm, lane-dense N on lanes.  Operands are
    cast to bf16; accumulation + epilogue in fp32.  Returns the row-PADDED
    (Mp, N) fp32 array (caller crops).
    """
    M, K = a.shape
    Kb, N = w.shape
    assert K == Kb and N % 128 == 0
    if tm is None:
        tm = _pick_row_tile(M)
    Mp = pl.cdiv(M, tm) * tm
    if Mp != M:
        a = jnp.pad(a, ((0, Mp - M), (0, 0)))
    a = a.astype(jnp.bfloat16)
    w = w.astype(jnp.bfloat16)
    alpha_arr = jnp.asarray(alpha, jnp.float32).reshape(1)

    in_specs = [
        pl.BlockSpec((tm, K), lambda i: (i, 0)),
        pl.BlockSpec((K, N), lambda i: (0, 0)),                       # resident weights
        pl.BlockSpec(memory_space=pltpu.MemorySpace.SMEM),            # alpha scalar
    ]
    args = [a, w, alpha_arr]
    if residual is None:
        kernel = _gemm_prelu_kernel
    else:
        assert residual.shape == (Mp, N), (residual.shape, (Mp, N))
        kernel = _gemm_prelu_add_kernel
        in_specs.append(pl.BlockSpec((tm, N), lambda i: (i, 0)))
        args.append(residual.astype(jnp.float32))

    return pl.pallas_call(
        kernel,
        out_shape=jax.ShapeDtypeStruct((Mp, N), jnp.float32),
        grid=(Mp // tm,),
        in_specs=in_specs,
        out_specs=pl.BlockSpec((tm, N), lambda i: (i, 0)),
        compiler_params=pltpu.CompilerParams(dimension_semantics=("parallel",)),
    )(*args)


def gemm_cols_prelu(wT, p, alpha, bias=None, residual=None):
    """out = PReLU(wT @ p [+ bias]) [- residual].  wT:(Cout,K), p:(K,M).

    Output (Cout, M): channels on sublanes, pixels on lanes (lane-dense even when
    Cout is tiny).  Operands cast to bf16, fp32 accumulation + epilogue.
    Supported combos: (bias, no residual) and (no bias, residual subtract).
    """
    Cout, K = wT.shape
    Kb, M = p.shape
    assert K == Kb
    tn = _pick_lane_tile(M)
    wT = wT.astype(jnp.bfloat16)
    p = p.astype(jnp.bfloat16)
    alpha_arr = jnp.asarray(alpha, jnp.float32).reshape(1)

    in_specs = [
        pl.BlockSpec((Cout, K), lambda i: (0, 0)),                    # resident weights
        pl.BlockSpec((K, tn), lambda i: (0, i)),
    ]
    args = [wT, p]

    if bias is not None:
        assert residual is None
        kernel = _gemmT_bias_prelu_kernel
        in_specs.append(pl.BlockSpec((Cout, 1), lambda i: (0, 0)))    # resident bias
        args.append(bias.reshape(Cout, 1).astype(jnp.float32))
        in_specs.append(pl.BlockSpec(memory_space=pltpu.MemorySpace.SMEM))
        args.append(alpha_arr)
    else:
        assert residual is not None and residual.shape == (Cout, M)
        kernel = _gemmT_prelu_sub_kernel
        in_specs.append(pl.BlockSpec(memory_space=pltpu.MemorySpace.SMEM))
        args.append(alpha_arr)
        in_specs.append(pl.BlockSpec((Cout, tn), lambda i: (0, i)))
        args.append(residual.astype(jnp.float32))

    return pl.pallas_call(
        kernel,
        out_shape=jax.ShapeDtypeStruct((Cout, M), jnp.float32),
        grid=(M // tn,),
        in_specs=in_specs,
        out_specs=pl.BlockSpec((Cout, tn), lambda i: (0, i)),
        compiler_params=pltpu.CompilerParams(dimension_semantics=("parallel",)),
    )(*args)


# ------------------------ plain-JAX layout / im2col glue --------------------

def _subpixel_deconv_weight(w_t, s):
    """ConvTranspose2d weight (Cin, Cout, 2s, 2s) -> (2*2*Cin, s*s*Cout) sub-pixel
    GEMM matrix.  Rows ordered (jh, jw, ci); columns ordered (rh, rw, co)."""
    Cin, Cout, k, k2 = w_t.shape
    assert k == 2 * s and k2 == k
    w6 = w_t.reshape(Cin, Cout, 2, s, 2, s)        # kh = s*th + rh, kw = s*tw + rw
    w6 = jnp.flip(w6, axis=(2, 4))                  # tap index j = 1 - t
    wmat = jnp.transpose(w6, (2, 4, 0, 3, 5, 1))    # (jh, jw, ci, rh, rw, co)
    return wmat.reshape(2 * 2 * Cin, s * s * Cout)


def _subpixel_deconv_patches(x_nhwc):
    """2x2 stride-1 im2col over the 1-padded input.
    Rows (b, qh, qw) with qh,qw in [0, H] x [0, W]; columns (jh, jw, ci)."""
    B, H, W, C = x_nhwc.shape
    xp = jnp.pad(x_nhwc, ((0, 0), (1, 1), (1, 1), (0, 0)))
    cols = [xp[:, jh:jh + H + 1, jw:jw + W + 1, :] for jh in range(2) for jw in range(2)]
    patches = jnp.stack(cols, axis=3)               # (B, H+1, W+1, 4, C)
    return patches.reshape(B * (H + 1) * (W + 1), 4 * C)


def _depth_to_space_crop(z, B, H, W, C, s):
    """z: (B*(H+1)*(W+1), s*s*C) -> ConvTranspose2d(k=2s, s, p=s//2) output
    (B, sH, sW, C)."""
    z5 = z.reshape(B, H + 1, W + 1, s, s, C)        # (b, qh, qw, rh, rw, c)
    y = jnp.transpose(z5, (0, 1, 3, 2, 4, 5)).reshape(B, s * (H + 1), s * (W + 1), C)
    p = s // 2
    return y[:, p:p + s * H, p:p + s * W, :]


def _conv_s_patches_T(x_nhwc, k, s, p):
    """Strided-conv im2col, TRANSPOSED: returns (k*k*C, B*Ho*Wo) with rows
    (kh, kw, ci) and columns (b, oh, ow), so pixels land on the GEMM lane axis."""
    B, H, W, C = x_nhwc.shape
    Ho = (H + 2 * p - k) // s + 1
    Wo = (W + 2 * p - k) // s + 1
    xp = jnp.pad(x_nhwc, ((0, 0), (p, p), (p, p), (0, 0)))
    cols = []
    for kh in range(k):
        for kw in range(k):
            cols.append(xp[:, kh:kh + s * (Ho - 1) + 1:s, kw:kw + s * (Wo - 1) + 1:s, :])
    taps = jnp.stack(cols, axis=0)                  # (k*k, B, Ho, Wo, C)
    taps = jnp.transpose(taps, (0, 4, 1, 2, 3))     # (k*k, C, B, Ho, Wo)
    return taps.reshape(k * k * C, B * Ho * Wo), Ho, Wo


# ----------------------------- UpBlock forward -------------------------------

def upblock_forward(x_nchw, params, s=4):
    B, Cin, H, W = x_nchw.shape
    x = x_nchw.astype(jnp.float32)
    C = params["conv_w"].shape[0]
    k = 2 * s

    # 1) 1x1 conv + bias + PReLU, channels-first GEMM (pixels lane-dense).
    xmatT = jnp.transpose(x, (1, 0, 2, 3)).reshape(Cin, B * H * W)          # (Cin, M)
    w1T = params["conv_w"].reshape(C, Cin)
    x1_cm = gemm_cols_prelu(w1T, xmatT, params["conv_a"],
                            bias=params["conv_b"])                          # (C, BHW)
    x1_nhwc = jnp.transpose(x1_cm.reshape(C, B, H, W), (1, 2, 3, 0))

    # 2) Deconv up1 as sub-pixel GEMM (K=4C, N=s*s*C) + PReLU; keep the
    #    pre-depth-to-space tensor h0_z around for the fused final add.
    w_up1 = _subpixel_deconv_weight(params["up1_w"], s)
    p1 = _subpixel_deconv_patches(x1_nhwc)
    M1 = p1.shape[0]                                                        # B*(H+1)*(W+1)
    tm = _pick_row_tile(M1)
    h0_z = gemm_rows_prelu(p1, w_up1, params["up1_a"], tm=tm)               # (Mp, s*s*C)
    h0 = _depth_to_space_crop(h0_z[:M1], B, H, W, C, s)                     # (B, sH, sW, C)

    # 3) Conv up2 (k=8, s=4, p=2, no bias) + PReLU with fused residual subtract
    #    (l0 - x1), channels-first GEMM so the tiny Cout stays off the lane axis.
    pT, Ho, Wo = _conv_s_patches_T(h0, k, s, s // 2)
    w2T = jnp.transpose(params["up2_w"], (0, 2, 3, 1)).reshape(C, k * k * C)
    d_cm = gemm_cols_prelu(w2T, pT, params["up2_a"], residual=x1_cm)
    d_nhwc = jnp.transpose(d_cm.reshape(C, B, Ho, Wo), (1, 2, 3, 0))

    # 4) Deconv up3 (sub-pixel) + PReLU with fused "+ h0" done in the pre-DTS
    #    layout, then a single depth-to-space + crop.
    w_up3 = _subpixel_deconv_weight(params["up3_w"], s)
    p3 = _subpixel_deconv_patches(d_nhwc)
    out_z = gemm_rows_prelu(p3, w_up3, params["up3_a"], residual=h0_z, tm=tm)
    out_nhwc = _depth_to_space_crop(out_z[:M1], B, H, W, C, s)
    return jnp.transpose(out_nhwc, (0, 3, 1, 2))                            # NHWC -> NCHW


# ----------------------------- fp32 reference (validation) -------------------

def upblock_reference(x_nchw, params, s=4):
    k = 2 * s
    pad = s // 2
    x = jnp.transpose(x_nchw, (0, 2, 3, 1)).astype(jnp.float32)

    def prelu(v, a):
        return jnp.where(v >= 0.0, v, a * v)

    def conv(xh, w, b, alpha, stride, p):
        y = jax.lax.conv_general_dilated(
            xh, jnp.transpose(w, (2, 3, 1, 0)), window_strides=(stride, stride),
            padding=[(p, p), (p, p)], dimension_numbers=("NHWC", "HWIO", "NHWC"))
        if b is not None:
            y = y + b
        return prelu(y, alpha)

    def deconv(xh, w_t, alpha, stride, p):
        w = jnp.transpose(jnp.flip(w_t, (2, 3)), (1, 0, 2, 3))
        y = jax.lax.conv_general_dilated(
            xh, jnp.transpose(w, (2, 3, 1, 0)), window_strides=(1, 1),
            padding=[(k - 1 - p, k - 1 - p)] * 2, lhs_dilation=(stride, stride),
            dimension_numbers=("NHWC", "HWIO", "NHWC"))
        return prelu(y, alpha)

    x1 = conv(x, params["conv_w"], params["conv_b"], params["conv_a"], 1, 0)
    h0 = deconv(x1, params["up1_w"], params["up1_a"], s, pad)
    l0 = conv(h0, params["up2_w"], None, params["up2_a"], s, pad)
    h1 = deconv(l0 - x1, params["up3_w"], params["up3_a"], s, pad)
    return jnp.transpose(h1 + h0, (0, 3, 1, 2))


# ----------------------------- params ----------------------------------------

def init_params(key, num_filter, num_stages=1):
    # Kaiming-normal-like init (a=0.01, leaky_relu), PReLU alpha = 0.01 (matches module).
    a = 0.01
    gain = (2.0 / (1.0 + a * a)) ** 0.5

    def kaiming(k, shape, fan_in):
        return (gain / (fan_in ** 0.5)) * jax.random.normal(k, shape, jnp.float32)

    C_in = num_filter * num_stages
    C = num_filter
    ks = jax.random.split(key, 4)
    return {
        # ConvBlock(C_in, C, 1, 1, 0, bias=True, prelu)   -- weight (Cout, Cin, 1, 1)
        "conv_w": kaiming(ks[0], (C, C_in, 1, 1), C_in),
        "conv_b": jnp.zeros((C,), jnp.float32),
        "conv_a": jnp.float32(0.01),
        # DeconvBlock(C, C, 8, 4, 2, bias=False, prelu)   -- weight (Cin, Cout, 8, 8)
        "up1_w": kaiming(ks[1], (C, C, 8, 8), C * 8 * 8),
        "up1_a": jnp.float32(0.01),
        # ConvBlock(C, C, 8, 4, 2, bias=False, prelu)     -- weight (Cout, Cin, 8, 8)
        "up2_w": kaiming(ks[2], (C, C, 8, 8), C * 8 * 8),
        "up2_a": jnp.float32(0.01),
        # DeconvBlock(C, C, 8, 4, 2, bias=False, prelu)
        "up3_w": kaiming(ks[3], (C, C, 8, 8), C * 8 * 8),
        "up3_a": jnp.float32(0.01),
    }


# ----------------------------- main -------------------------------------------

if __name__ == "__main__":
    key = jax.random.PRNGKey(0)
    kx, kp = jax.random.split(key)
    num_filter = 8
    num_stages = 1
    B, H, W = 2, 16, 16
    x = jax.random.normal(kx, (B, num_filter * num_stages, H, W), jnp.float32)
    params = init_params(kp, num_filter, num_stages)

    out = jax.jit(upblock_forward)(x, params)
    out = jax.block_until_ready(out)
    assert out.shape == (B, num_filter, 4 * H, 4 * W), out.shape
    assert bool(jnp.all(jnp.isfinite(out)))

    # Structural-correctness check against an fp32 XLA reference (loose tolerance:
    # the Pallas GEMMs run bf16 operands with fp32 accumulation).
    ref = jax.block_until_ready(jax.jit(upblock_reference)(x, params))
    max_err = float(jnp.max(jnp.abs(out - ref)))
    scale = float(jnp.max(jnp.abs(ref))) + 1e-6
    assert max_err < 0.1 * scale, (max_err, scale)

    print("KERNEL_OK")
</pallas_src>

<mosaic_0001>
module attributes {stable_mosaic.version = 11 : i64} {
  func.func @_gemmT_bias_prelu_kernel(%arg0: i32, %arg1: memref<8x8xbf16, #tpu.memory_space<vmem>>, %arg2: memref<8x256xbf16, #tpu.memory_space<vmem>>, %arg3: memref<8x1xf32, #tpu.memory_space<vmem>>, %arg4: memref<1xf32, #tpu.memory_space<smem>>, %arg5: memref<8x256xf32, #tpu.memory_space<vmem>>) attributes {dimension_semantics = [#tpu.dimension_semantics<parallel>], iteration_bounds = array<i64: 2>, scalar_prefetch = 0 : i64, scratch_operands = 0 : i64, tpu.core_type = #tpu.core_type<tc>, window_params = [{pipeline_mode = #tpu.pipeline_mode<synchronous>, transform_indices = @transform_0, window_bounds = array<i64: 8, 8>}, {transform_indices = @transform_1, window_bounds = array<i64: 8, 256>}, {pipeline_mode = #tpu.pipeline_mode<synchronous>, transform_indices = @transform_2, window_bounds = array<i64: 8, 1>}, {transform_indices = @transform_3, window_bounds = array<i64: 1>}, {transform_indices = @transform_4, window_bounds = array<i64: 8, 256>}]} {
    %c0 = arith.constant 0 : index
    %c0_0 = arith.constant 0 : index
    %0 = vector.load %arg1[%c0, %c0_0] : memref<8x8xbf16, #tpu.memory_space<vmem>>, vector<8x8xbf16>
    %c0_1 = arith.constant 0 : index
    %c0_2 = arith.constant 0 : index
    %1 = vector.load %arg2[%c0_1, %c0_2] : memref<8x256xbf16, #tpu.memory_space<vmem>>, vector<8x256xbf16>
    %cst = arith.constant dense<0.000000e+00> : vector<8x256xf32>
    %2 = tpu.matmul %0, %1, %cst {dimension_numbers = #tpu.dot_dimension_numbers<[1], [0], [0], [1], [0, 0, 1, 1], [], []>} : vector<8x8xbf16>, vector<8x256xbf16>, vector<8x256xf32> -> vector<8x256xf32>
    %c0_3 = arith.constant 0 : index
    %c0_4 = arith.constant 0 : index
    %3 = vector.load %arg3[%c0_3, %c0_4] : memref<8x1xf32, #tpu.memory_space<vmem>>, vector<8x1xf32>
    %4 = vector.broadcast %3 : vector<8x1xf32> to vector<8x256xf32>
    %5 = arith.addf %2, %4 : vector<8x256xf32>
    %c0_5 = arith.constant 0 : index
    %6 = memref.load %arg4[%c0_5] : memref<1xf32, #tpu.memory_space<smem>>
    %cst_6 = arith.constant 0.000000e+00 : f32
    %7 = vector.broadcast %cst_6 : f32 to vector<8x256xf32>
    %8 = arith.cmpf oge, %5, %7 : vector<8x256xf32>
    %9 = vector.broadcast %6 : f32 to vector<8x256xf32>
    %10 = arith.mulf %9, %5 : vector<8x256xf32>
    %11 = arith.select %8, %5, %10 : vector<8x256xi1>, vector<8x256xf32>
    %c0_7 = arith.constant 0 : index
    %c0_8 = arith.constant 0 : index
    %12 = vector.load %arg5[%c0_7, %c0_8] : memref<8x256xf32, #tpu.memory_space<vmem>>, vector<8x256xf32>
    tpu.vector_store %arg5[%c0_7, %c0_8], %11 {strides = array<i32>} : memref<8x256xf32, #tpu.memory_space<vmem>>, vector<8x256xf32>,
    return
  }
  func.func @transform_0(%arg0: i32) -> (i32, i32) {
    %c0_i32 = arith.constant 0 : i32
    %c0_i32_0 = arith.constant 0 : i32
    %c0_i32_1 = arith.constant 0 : i32
    return %c0_i32, %c0_i32_0 : i32, i32
  }
  func.func @transform_1(%arg0: i32) -> (i32, i32) {
    %c0_i32 = arith.constant 0 : i32
    %c0_i32_0 = arith.constant 0 : i32
    return %c0_i32, %arg0 : i32, i32
  }
  func.func @transform_2(%arg0: i32) -> (i32, i32) {
    %c0_i32 = arith.constant 0 : i32
    %c0_i32_0 = arith.constant 0 : i32
    %c0_i32_1 = arith.constant 0 : i32
    return %c0_i32, %c0_i32_0 : i32, i32
  }
  func.func @transform_3(%arg0: i32) -> i32 {
    %c0_i32 = arith.constant 0 : i32
    %c0_i32_0 = arith.constant 0 : i32
    return %c0_i32 : i32
  }
  func.func @transform_4(%arg0: i32) -> (i32, i32) {
    %c0_i32 = arith.constant 0 : i32
    %c0_i32_0 = arith.constant 0 : i32
    return %c0_i32, %arg0 : i32, i32
  }
}

module attributes {stable_mosaic.version = 11 : i64} {
  func.func @_gemm_prelu_kernel(%arg0: i32, %arg1: memref<128x32xbf16, #tpu.memory_space<vmem>>, %arg2: memref<32x128xbf16, #tpu.memory_space<vmem>>, %arg3: memref<1xf32, #tpu.memory_space<smem>>, %arg4: memref<128x128xf32, #tpu.memory_space<vmem>>) attributes {dimension_semantics = [#tpu.dimension_semantics<parallel>], iteration_bounds = array<i64: 5>, scalar_prefetch = 0 : i64, scratch_operands = 0 : i64, tpu.core_type = #tpu.core_type<tc>, window_params = [{transform_indices = @transform_0, window_bounds = array<i64: 128, 32>}, {pipeline_mode = #tpu.pipeline_mode<synchronous>, transform_indices = @transform_1, window_bounds = array<i64: 32, 128>}, {transform_indices = @transform_2, window_bounds = array<i64: 1>}, {transform_indices = @transform_3, window_bounds = array<i64: 128, 128>}]} {
    %c0 = arith.constant 0 : index
    %c0_0 = arith.constant 0 : index
    %0 = vector.load %arg1[%c0, %c0_0] : memref<128x32xbf16, #tpu.memory_space<vmem>>, vector<128x32xbf16>
    %c0_1 = arith.constant 0 : index
    %c0_2 = arith.constant 0 : index
    %1 = vector.load %arg2[%c0_1, %c0_2] : memref<32x128xbf16, #tpu.memory_space<vmem>>, vector<32x128xbf16>
    %cst = arith.constant dense<0.000000e+00> : vector<128x128xf32>
    %2 = tpu.matmul %0, %1, %cst {dimension_numbers = #tpu.dot_dimension_numbers<[1], [0], [0], [1], [0, 0, 1, 1], [], []>} : vector<128x32xbf16>, vector<32x128xbf16>, vector<128x128xf32> -> vector<128x128xf32>
    %c0_3 = arith.constant 0 : index
    %3 = memref.load %arg3[%c0_3] : memref<1xf32, #tpu.memory_space<smem>>
    %cst_4 = arith.constant 0.000000e+00 : f32
    %4 = vector.broadcast %cst_4 : f32 to vector<128x128xf32>
    %5 = arith.cmpf oge, %2, %4 : vector<128x128xf32>
    %6 = vector.broadcast %3 : f32 to vector<128x128xf32>
    %7 = arith.mulf %6, %2 : vector<128x128xf32>
    %8 = arith.select %5, %2, %7 : vector<128x128xi1>, vector<128x128xf32>
    %c0_5 = arith.constant 0 : index
    %c0_6 = arith.constant 0 : index
    %9 = vector.load %arg4[%c0_5, %c0_6] : memref<128x128xf32, #tpu.memory_space<vmem>>, vector<128x128xf32>
    tpu.vector_store %arg4[%c0_5, %c0_6], %8 {strides = array<i32>} : memref<128x128xf32, #tpu.memory_space<vmem>>, vector<128x128xf32>,
    return
  }
  func.func @transform_0(%arg0: i32) -> (i32, i32) {
    %c0_i32 = arith.constant 0 : i32
    %c0_i32_0 = arith.constant 0 : i32
    return %arg0, %c0_i32 : i32, i32
  }
  func.func @transform_1(%arg0: i32) -> (i32, i32) {
    %c0_i32 = arith.constant 0 : i32
    %c0_i32_0 = arith.constant 0 : i32
    %c0_i32_1 = arith.constant 0 : i32
    return %c0_i32, %c0_i32_0 : i32, i32
  }
  func.func @transform_2(%arg0: i32) -> i32 {
    %c0_i32 = arith.constant 0 : i32
    %c0_i32_0 = arith.constant 0 : i32
    return %c0_i32 : i32
  }
  func.func @transform_3(%arg0: i32) -> (i32, i32) {
    %c0_i32 = arith.constant 0 : i32
    %c0_i32_0 = arith.constant 0 : i32
    return %arg0, %c0_i32 : i32, i32
  }
}

module attributes {stable_mosaic.version = 11 : i64} {
  func.func @_gemmT_prelu_sub_kernel(%arg0: i32, %arg1: memref<8x512xbf16, #tpu.memory_space<vmem>>, %arg2: memref<512x256xbf16, #tpu.memory_space<vmem>>, %arg3: memref<1xf32, #tpu.memory_space<smem>>, %arg4: memref<8x256xf32, #tpu.memory_space<vmem>>, %arg5: memref<8x256xf32, #tpu.memory_space<vmem>>) attributes {dimension_semantics = [#tpu.dimension_semantics<parallel>], iteration_bounds = array<i64: 2>, scalar_prefetch = 0 : i64, scratch_operands = 0 : i64, tpu.core_type = #tpu.core_type<tc>, window_params = [{pipeline_mode = #tpu.pipeline_mode<synchronous>, transform_indices = @transform_0, window_bounds = array<i64: 8, 512>}, {transform_indices = @transform_1, window_bounds = array<i64: 512, 256>}, {transform_indices = @transform_2, window_bounds = array<i64: 1>}, {transform_indices = @transform_3, window_bounds = array<i64: 8, 256>}, {transform_indices = @transform_4, window_bounds = array<i64: 8, 256>}]} {
    %c0 = arith.constant 0 : index
    %c0_0 = arith.constant 0 : index
    %0 = vector.load %arg1[%c0, %c0_0] : memref<8x512xbf16, #tpu.memory_space<vmem>>, vector<8x512xbf16>
    %c0_1 = arith.constant 0 : index
    %c0_2 = arith.constant 0 : index
    %1 = vector.load %arg2[%c0_1, %c0_2] : memref<512x256xbf16, #tpu.memory_space<vmem>>, vector<512x256xbf16>
    %cst = arith.constant dense<0.000000e+00> : vector<8x256xf32>
    %2 = tpu.matmul %0, %1, %cst {dimension_numbers = #tpu.dot_dimension_numbers<[1], [0], [0], [1], [0, 0, 1, 1], [], []>} : vector<8x512xbf16>, vector<512x256xbf16>, vector<8x256xf32> -> vector<8x256xf32>
    %c0_3 = arith.constant 0 : index
    %3 = memref.load %arg3[%c0_3] : memref<1xf32, #tpu.memory_space<smem>>
    %cst_4 = arith.constant 0.000000e+00 : f32
    %4 = vector.broadcast %cst_4 : f32 to vector<8x256xf32>
    %5 = arith.cmpf oge, %2, %4 : vector<8x256xf32>
    %6 = vector.broadcast %3 : f32 to vector<8x256xf32>
    %7 = arith.mulf %6, %2 : vector<8x256xf32>
    %8 = arith.select %5, %2, %7 : vector<8x256xi1>, vector<8x256xf32>
    %c0_5 = arith.constant 0 : index
    %c0_6 = arith.constant 0 : index
    %9 = vector.load %arg4[%c0_5, %c0_6] : memref<8x256xf32, #tpu.memory_space<vmem>>, vector<8x256xf32>
    %10 = arith.subf %8, %9 : vector<8x256xf32>
    %c0_7 = arith.constant 0 : index
    %c0_8 = arith.constant 0 : index
    %11 = vector.load %arg5[%c0_7, %c0_8] : memref<8x256xf32, #tpu.memory_space<vmem>>, vector<8x256xf32>
    tpu.vector_store %arg5[%c0_7, %c0_8], %10 {strides = array<i32>} : memref<8x256xf32, #tpu.memory_space<vmem>>, vector<8x256xf32>,
    return
  }
  func.func @transform_0(%arg0: i32) -> (i32, i32) {
    %c0_i32 = arith.constant 0 : i32
    %c0_i32_0 = arith.constant 0 : i32
    %c0_i32_1 = arith.constant 0 : i32
    return %c0_i32, %c0_i32_0 : i32, i32
  }
  func.func @transform_1(%arg0: i32) -> (i32, i32) {
    %c0_i32 = arith.constant 0 : i32
    %c0_i32_0 = arith.constant 0 : i32
    return %c0_i32, %arg0 : i32, i32
  }
  func.func @transform_2(%arg0: i32) -> i32 {
    %c0_i32 = arith.constant 0 : i32
    %c0_i32_0 = arith.constant 0 : i32
    return %c0_i32 : i32
  }
  func.func @transform_3(%arg0: i32) -> (i32, i32) {
    %c0_i32 = arith.constant 0 : i32
    %c0_i32_0 = arith.constant 0 : i32
    return %c0_i32, %arg0 : i32, i32
  }
  func.func @transform_4(%arg0: i32) -> (i32, i32) {
    %c0_i32 = arith.constant 0 : i32
    %c0_i32_0 = arith.constant 0 : i32
    return %c0_i32, %arg0 : i32, i32
  }
}

module attributes {stable_mosaic.version = 11 : i64} {
  func.func @_gemm_prelu_add_kernel(%arg0: i32, %arg1: memref<128x32xbf16, #tpu.memory_space<vmem>>, %arg2: memref<32x128xbf16, #tpu.memory_space<vmem>>, %arg3: memref<1xf32, #tpu.memory_space<smem>>, %arg4: memref<128x128xf32, #tpu.memory_space<vmem>>, %arg5: memref<128x128xf32, #tpu.memory_space<vmem>>) attributes {dimension_semantics = [#tpu.dimension_semantics<parallel>], iteration_bounds = array<i64: 5>, scalar_prefetch = 0 : i64, scratch_operands = 0 : i64, tpu.core_type = #tpu.core_type<tc>, window_params = [{transform_indices = @transform_0, window_bounds = array<i64: 128, 32>}, {pipeline_mode = #tpu.pipeline_mode<synchronous>, transform_indices = @transform_1, window_bounds = array<i64: 32, 128>}, {transform_indices = @transform_2, window_bounds = array<i64: 1>}, {transform_indices = @transform_3, window_bounds = array<i64: 128, 128>}, {transform_indices = @transform_4, window_bounds = array<i64: 128, 128>}]} {
    %c0 = arith.constant 0 : index
    %c0_0 = arith.constant 0 : index
    %0 = vector.load %arg1[%c0, %c0_0] : memref<128x32xbf16, #tpu.memory_space<vmem>>, vector<128x32xbf16>
    %c0_1 = arith.constant 0 : index
    %c0_2 = arith.constant 0 : index
    %1 = vector.load %arg2[%c0_1, %c0_2] : memref<32x128xbf16, #tpu.memory_space<vmem>>, vector<32x128xbf16>
    %cst = arith.constant dense<0.000000e+00> : vector<128x128xf32>
    %2 = tpu.matmul %0, %1, %cst {dimension_numbers = #tpu.dot_dimension_numbers<[1], [0], [0], [1], [0, 0, 1, 1], [], []>} : vector<128x32xbf16>, vector<32x128xbf16>, vector<128x128xf32> -> vector<128x128xf32>
    %c0_3 = arith.constant 0 : index
    %3 = memref.load %arg3[%c0_3] : memref<1xf32, #tpu.memory_space<smem>>
    %cst_4 = arith.constant 0.000000e+00 : f32
    %4 = vector.broadcast %cst_4 : f32 to vector<128x128xf32>
    %5 = arith.cmpf oge, %2, %4 : vector<128x128xf32>
    %6 = vector.broadcast %3 : f32 to vector<128x128xf32>
    %7 = arith.mulf %6, %2 : vector<128x128xf32>
    %8 = arith.select %5, %2, %7 : vector<128x128xi1>, vector<128x128xf32>
    %c0_5 = arith.constant 0 : index
    %c0_6 = arith.constant 0 : index
    %9 = vector.load %arg4[%c0_5, %c0_6] : memref<128x128xf32, #tpu.memory_space<vmem>>, vector<128x128xf32>
    %10 = arith.addf %8, %9 : vector<128x128xf32>
    %c0_7 = arith.constant 0 : index
    %c0_8 = arith.constant 0 : index
    %11 = vector.load %arg5[%c0_7, %c0_8] : memref<128x128xf32, #tpu.memory_space<vmem>>, vector<128x128xf32>
    tpu.vector_store %arg5[%c0_7, %c0_8], %10 {strides = array<i32>} : memref<128x128xf32, #tpu.memory_space<vmem>>, vector<128x128xf32>,
    return
  }
  func.func @transform_0(%arg0: i32) -> (i32, i32) {
    %c0_i32 = arith.constant 0 : i32
    %c0_i32_0 = arith.constant 0 : i32
    return %arg0, %c0_i32 : i32, i32
  }
  func.func @transform_1(%arg0: i32) -> (i32, i32) {
    %c0_i32 = arith.constant 0 : i32
    %c0_i32_0 = arith.constant 0 : i32
    %c0_i32_1 = arith.constant 0 : i32
    return %c0_i32, %c0_i32_0 : i32, i32
  }
  func.func @transform_2(%arg0: i32) -> i32 {
    %c0_i32 = arith.constant 0 : i32
    %c0_i32_0 = arith.constant 0 : i32
    return %c0_i32 : i32
  }
  func.func @transform_3(%arg0: i32) -> (i32, i32) {
    %c0_i32 = arith.constant 0 : i32
    %c0_i32_0 = arith.constant 0 : i32
    return %arg0, %c0_i32 : i32, i32
  }
  func.func @transform_4(%arg0: i32) -> (i32, i32) {
    %c0_i32 = arith.constant 0 : i32
    %c0_i32_0 = arith.constant 0 : i32
    return %arg0, %c0_i32 : i32, i32
  }
}

</mosaic_0001>

<llo_original>
// kernel: upblock_forward.4
$region0: #{upblock_forward.4}
  #allocation0 [shape = 'u32[]', space=smem, size = 0x4, offset = 0x4, fixed_abs, tag = 'smem constant byte address 0x4 - core index']
  #allocation1 [shape = 'u32[144,128]{1,0:T(1,128)}', space=vmem, size = 0x12000, scoped, tag = 'internal scratch']
  #allocation2 [shape = 'f32[1]{0:T(128)S(6)}', space=smem, size = 0x200, scoped, tag = 'scoped memory for upblock_forward.4']
  %s0 = inlined_call_operand.vmem [shape: bf16[8,8], index: 0, kind: input, shape index: {}]
  %s1 = inlined_call_operand.vmem [shape: bf16[8,512], index: 1, kind: input, shape index: {}]
  %s2 = inlined_call_operand.vmem [shape: f32[8,1], index: 2, kind: input, shape index: {}]
  %s3 = inlined_call_operand.<no memory space> [shape: f32[1], index: 3, kind: input, shape index: {}]
  %s4 = inlined_call_operand.vmem [shape: f32[8,512], index: 4, kind: output, shape index: {}]
  %s5 = sld [smem:[#allocation0]]
  $region49: #{upblock_forward.4} parent=0
    _
  %s7 = ssub.s32 1, %s5
  %s8 = scalar_select 0, %s7, %s5
  %9 = sst [smem:[#allocation2]] %s3
  loop: start=0, step=1, limit=4
  $region2: #{upblock_forward.4} parent=0 // loop_pre_header
    _
  $region3: #{upblock_forward.4} parent=0 // loop_header
    %s11 = sphi 0, %s15
    %p12 = scmp.ge.s32.totalorder %s11, 4
    %s19 = sphi 0, %s19
    %s21 = sphi 0, %s19
    %s22 = sphi 0, %s21
    %s36 = sphi 0, %s22
    %s42 = sphi 0, %s44
    %s45 = sphi 0, %s42
    %s46 = sphi 0, %s45
    %s62 = sphi 0, %s46
    %s66 = sphi 0, %s66
    %s68 = sphi 0, %s66
    %s69 = sphi 0, %s68
    %s83 = sphi 0, %s69
    %s87 = sphi 0, %s87
    %s89 = sphi 0, %s87
    %s90 = sphi 0, %s89
    %s104 = sphi 0, %s90
    %s110 = sphi 0, %s112
    %s113 = sphi 0, %s110
    %s114 = sphi 0, %s113
    %s130 = sphi 0, %s114
  $region4: #{upblock_forward.4} parent=0 // loop_header_branch
    %14 = sbr.rel (%p12) target = $region8
  $region5: #{upblock_forward.4} parent=0 // loop_body
    %s16 = ssub.s32 %s11, 1
    %s17 = ssub.s32 %s11, 2
    %s18 = sadd.s32 %s11, 1
    %s20 = sadd.s32 %s19, 1
    %p23 = scmp.eq.s32.totalorder %s11, 1
    %p24 = scmp.ne.s32.totalorder %s19, %s21
    %p25 = scmp.eq.s32.totalorder %s11, 0
    %p26 = por %p24, %p25
    %p27 = scmp.ne.s32.totalorder %s19, %s21
    %p28 = scmp.eq.s32.totalorder %s16, 1
    %p29 = por %p27, %p28
    %p30 = scmp.ne.s32.totalorder %s21, %s22
    %p31 = scmp.eq.s32.totalorder %s16, 0
    %p32 = por %p30, %p31
    %p33 = scmp.ne.s32.totalorder %s21, %s22
    %p34 = scmp.eq.s32.totalorder %s17, 1
    %p35 = por %p33, %p34
    %p37 = scmp.ne.s32.totalorder %s22, %s36
    %p38 = scmp.eq.s32.totalorder %s17, 0
    %p39 = por %p37, %p38
    %s40 = ssub.s32 %s11, %s18
    %p41 = scmp.eq.s32.totalorder %s40, 0
    %s43 = sadd.s32 %s42, 1
    %s44 = scalar_select %p41, %s42, %s43
    %p47 = pneg %p41
    %p48 = scmp.eq.s32.totalorder %s11, 1
    %p49 = por %p47, %p48
    %p50 = scmp.ne.s32.totalorder %s42, %s45
    %p51 = scmp.eq.s32.totalorder %s11, 0
    %p52 = por %p50, %p51
    %p53 = scmp.ne.s32.totalorder %s42, %s45
    %p54 = scmp.eq.s32.totalorder %s16, 1
    %p55 = por %p53, %p54
    %p56 = scmp.ne.s32.totalorder %s45, %s46
    %p57 = scmp.eq.s32.totalorder %s16, 0
    %p58 = por %p56, %p57
    %p59 = scmp.ne.s32.totalorder %s45, %s46
    %p60 = scmp.eq.s32.totalorder %s17, 1
    %p61 = por %p59, %p60
    %p63 = scmp.ne.s32.totalorder %s46, %s62
    %p64 = scmp.eq.s32.totalorder %s17, 0
    %p65 = por %p63, %p64
    %s67 = sadd.s32 %s66, 1
    %p70 = scmp.eq.s32.totalorder %s11, 1
    %p71 = scmp.ne.s32.totalorder %s66, %s68
    %p72 = scmp.eq.s32.totalorder %s11, 0
    %p73 = por %p71, %p72
    %p74 = scmp.ne.s32.totalorder %s66, %s68
    %p75 = scmp.eq.s32.totalorder %s16, 1
    %p76 = por %p74, %p75
    %p77 = scmp.ne.s32.totalorder %s68, %s69
    %p78 = scmp.eq.s32.totalorder %s16, 0
    %p79 = por %p77, %p78
    %p80 = scmp.ne.s32.totalorder %s68, %s69
    %p81 = scmp.eq.s32.totalorder %s17, 1
    %p82 = por %p80, %p81
    %p84 = scmp.ne.s32.totalorder %s69, %s83
    %p85 = scmp.eq.s32.totalorder %s17, 0
    %p86 = por %p84, %p85
    %s88 = sadd.s32 %s87, 1
    %p91 = scmp.eq.s32.totalorder %s11, 1
    %p92 = scmp.ne.s32.totalorder %s87, %s89
    %p93 = scmp.eq.s32.totalorder %s11, 0
    %p94 = por %p92, %p93
    %p95 = scmp.ne.s32.totalorder %s87, %s89
    %p96 = scmp.eq.s32.totalorder %s16, 1
    %p97 = por %p95, %p96
    %p98 = scmp.ne.s32.totalorder %s89, %s90
    %p99 = scmp.eq.s32.totalorder %s16, 0
    %p100 = por %p98, %p99
    %p101 = scmp.ne.s32.totalorder %s89, %s90
    %p102 = scmp.eq.s32.totalorder %s17, 1
    %p103 = por %p101, %p102
    %p105 = scmp.ne.s32.totalorder %s90, %s104
    %p106 = scmp.eq.s32.totalorder %s17, 0
    %p107 = por %p105, %p106
    %s108 = ssub.s32 %s11, %s18
    %p109 = scmp.eq.s32.totalorder %s108, 0
    %s111 = sadd.s32 %s110, 1
    %s112 = scalar_select %p109, %s110, %s111
    %p115 = pneg %p109
    %p116 = scmp.eq.s32.totalorder %s11, 1
    %p117 = por %p115, %p116
    %p118 = scmp.ne.s32.totalorder %s110, %s113
    %p119 = scmp.eq.s32.totalorder %s11, 0
    %p120 = por %p118, %p119
    %p121 = scmp.ne.s32.totalorder %s110, %s113
    %p122 = scmp.eq.s32.totalorder %s16, 1
    %p123 = por %p121, %p122
    %p124 = scmp.ne.s32.totalorder %s113, %s114
    %p125 = scmp.eq.s32.totalorder %s16, 0
    %p126 = por %p124, %p125
    %p127 = scmp.ne.s32.totalorder %s113, %s114
    %p128 = scmp.eq.s32.totalorder %s17, 1
    %p129 = por %p127, %p128
    %p131 = scmp.ne.s32.totalorder %s114, %s130
    %p132 = scmp.eq.s32.totalorder %s17, 0
    %p133 = por %p131, %p132
    %p134 = scmp.le.s32.totalorder 1, %s11
    %p135 = scmp.lt.s32.totalorder %s11, 3
    %p136 = pnand %p134, %p135
    %p137 = pneg %p136
    // Predicated region
    $region9: #{upblock_forward.4} parent=5 // pred_check
      _
    $region10: #{upblock_forward.4} parent=5 // pred_check_branch
      %139 = sbr.rel (%p136) target = $region12
    $region11: #{upblock_forward.4} parent=5 // pred_region
      %s140 = ssub.s32 %s11, 1
      // Predicated region
      $region13: #{upblock_forward.4} parent=11 // pred_check
        %p141 = pneg %p32
      $region14: #{upblock_forward.4} parent=11 // pred_check_branch
        %143 = sbr.rel (%p141) target = $region16
      $region15: #{upblock_forward.4} parent=11 // pred_region
        _
      $region16: #{upblock_forward.4} parent=11 // pred_fallthru
        _
      // Predicated region
      $region17: #{upblock_forward.4} parent=11 // pred_check
        %p144 = pneg %p79
      $region18: #{upblock_forward.4} parent=11 // pred_check_branch
        %146 = sbr.rel (%p144) target = $region20
      $region19: #{upblock_forward.4} parent=11 // pred_region
        _
      $region20: #{upblock_forward.4} parent=11 // pred_fallthru
        _
      // Predicated region
      $region21: #{upblock_forward.4} parent=11 // pred_check
        %p147 = pneg %p100
      $region22: #{upblock_forward.4} parent=11 // pred_check_branch
        %149 = sbr.rel (%p147) target = $region24
      $region23: #{upblock_forward.4} parent=11 // pred_region
        _
      $region24: #{upblock_forward.4} parent=11 // pred_fallthru
        _
    $region12: #{upblock_forward.4} parent=5 // pred_fallthru
      _
    %p150 = scmp.lt.s32.totalorder %s11, 2
    // Predicated region
    $region25: #{upblock_forward.4} parent=5 // pred_check
      %p151 = pneg %p150
    $region26: #{upblock_forward.4} parent=5 // pred_check_branch
      %153 = sbr.rel (%p151) target = $region28
    $region27: #{upblock_forward.4} parent=5 // pred_region
      // Predicated region
      $region29: #{upblock_forward.4} parent=27 // pred_check
        %p154 = pneg %p52
      $region30: #{upblock_forward.4} parent=27 // pred_check_branch
        %156 = sbr.rel (%p154) target = $region32
      $region31: #{upblock_forward.4} parent=27 // pred_region
        %s157 = smul.u32 2, %s11
        %p158 = scmp.lt.s32.totalorder %s157, 3
        %s159 = scalar_select %p158, %s157, 3
        %s160 = smul.addr %s159, 4
        %s161 = scalar_lea.vmem %s1, %s160
        %s162 = smul.u32 2, %s11
      $region32: #{upblock_forward.4} parent=27 // pred_fallthru
        _
    $region28: #{upblock_forward.4} parent=5 // pred_fallthru
      _
    %p163 = scmp.le.s32.totalorder 1, %s11
    %p164 = scmp.lt.s32.totalorder %s11, 3
    %p165 = pnand %p163, %p164
    %p166 = pneg %p165
    // Predicated region
    $region33: #{upblock_forward.4} parent=5 // pred_check
      _
    $region34: #{upblock_forward.4} parent=5 // pred_check_branch
      %168 = sbr.rel (%p165) target = $region36
    $region35: #{upblock_forward.4} parent=5 // pred_region
      %s169 = ssub.s32 %s11, 1
      %p170 = pneg %p32
      %p171 = pneg %p29
      %s172 = smul.u32 2, %s16
      %p173 = scmp.lt.s32.totalorder %s172, 3
      %s174 = scalar_select %p173, %s172, 3
      %s175 = smul.addr %s174, 4
      %s176 = scalar_lea.vmem %s1, %s175
      %p177 = pneg %p58
      %p178 = pneg %p55
      %p179 = pneg %p79
      %p180 = pneg %p76
      %p181 = pneg %p100
      %p182 = pneg %p97
      %p183 = pneg %p126
      %p184 = pneg %p123
      %s185 = smul.u32 2, %s16
      %p186 = scmp.lt.s32.totalorder %s185, 3
      %s187 = scalar_select %p186, %s185, 3
      %s188 = smul.addr %s187, 8
      %s189 = scalar_lea.vmem %s4, %s188
      %s190 = smul.u32 2, %s16
      %p191 = scmp.lt.s32.totalorder %s190, 3
      %s192 = scalar_select %p191, %s190, 3
      %s193 = smul.addr %s192, 4
      %s194 = scalar_lea.vmem %s1, %s193
      %s195 = smul.u32 2, %s16
      %s196 = smul.u32 2, %s16
      %p197 = scmp.lt.s32.totalorder %s196, 3
      %s198 = scalar_select %p197, %s196, 3
      %s199 = smul.addr %s198, 8
      %s200 = scalar_lea.vmem %s4, %s199
      %s201 = smul.u32 2, %s16
      %v203 = vld [vmem:[%s0] sm:$0xf]
      %v204 = vld [vmem:[%s194] sm:$0xff]
      %v205 = vld [vmem:[%s2] sm:$0xff]
      %207 = vset.pattern.permute.xlu0 0
      %208 = vperm.xlu0 %207, %v205
      %v209 = vpop.permute.xlu0 %208
      %v212 = vunpack.c.l.b16 %v204
      %v213 = vunpack.c.h.b16 %v204
      %v214 = vpack.c.b16 %v212, %v212
      %v215 = vpack.c.b16 %v213, %v213
      %vm216 = vcmask 64512
      %v218 = vsel %vm216, %v203, 0
      %vm220 = vcmask 1043456
      %v222 = vsel %vm220, %v214, 0
      %v225 = vsel %vm220, %v215, 0
      %227 = vmatprep.subr.bf16.mxu0 %v225
      %228 = vmatpush1.bf16.msra.mxu0 %v222
      %229 = vmatprep.subr.bf16.mxu0 0
      %230 = vmatpush1.bf16.msra.mxu0 0
      %231 = vmatprep.subr.bf16.mxu0 0
      %232 = vmatpush1.bf16.msra.mxu0 0
      %233 = vmatprep.subr.bf16.mxu0 0
      %234 = vmatpush1.bf16.msra.mxu0 0
      %235 = vmatprep.subr.bf16.mxu0 0
      %236 = vmatpush1.bf16.msra.mxu0 0
      %237 = vmatprep.subr.bf16.mxu0 0
      %238 = vmatpush1.bf16.msra.mxu0 0
      %239 = vmatprep.subr.bf16.mxu0 0
      %240 = vmatpush1.bf16.msra.mxu0 0
      %241 = vmatprep.subr.bf16.mxu0 0
      %242 = vmatpush1.bf16.msra.mxu0 0
      %243 = vmatprep.subr.bf16.mxu0 0
      %244 = vmatpush1.bf16.msra.mxu0 0
      %245 = vmatprep.subr.bf16.mxu0 0
      %246 = vmatpush1.bf16.msra.mxu0 0
      %247 = vmatprep.subr.bf16.mxu0 0
      %248 = vmatpush1.bf16.msra.mxu0 0
      %249 = vmatprep.subr.bf16.mxu0 0
      %250 = vmatpush1.bf16.msra.mxu0 0
      %251 = vmatprep.subr.bf16.mxu0 0
      %252 = vmatpush1.bf16.msra.mxu0 0
      %253 = vmatprep.subr.bf16.mxu0 0
      %254 = vmatpush1.bf16.msra.mxu0 0
      %255 = vmatprep.subr.bf16.mxu0 0
      %256 = vmatpush1.bf16.msra.mxu0 0
      %257 = vmatprep.subr.bf16.mxu0 0
      %258 = vmatpush1.bf16.msra.mxu0 0
      %259 = vmatprep.mubr.bf16.mxu0 0
      %260 = vmatmul.mubr.bf16.gmra.mrb[0].mxu0 %v218
      %v261 = vpop.f32.mrb[0].mxu0
      %v262 = vadd.f32 %v209, %v261
      %v263 = vpop.f32.mrb[0].mxu0
      %v264 = vadd.f32 %v209, %v263
      %v265 = vpop.f32.mrb[0].mxu0
      %v266 = vpop.f32.mrb[0].mxu0
      %267 = vdwg.mxu0
      %s268 = sld [smem:[#allocation2]]
      %vm269 = vcmp.ge.f32.partialorder %v262, 0.0
      %vm270 = vcmp.ge.f32.partialorder %v264, 0.0
      %v271 = vstv %s268
      %v272 = vmul.f32 %v271, %v262
      %v273 = vmul.f32 %v271, %v264
      %v274 = vsel %vm269, %v262, %v272
      %v275 = vsel %vm270, %v264, %v273
      %276 = vst [vmem:[%s200] sm:$0xff] %v274
      %277 = vst [vmem:[%s200 + $0x8] sm:$0xff] %v275
      %s278 = smul.u32 2, %s16
      %p279 = scmp.lt.s32.totalorder %s278, 3
      %s280 = scalar_select %p279, %s278, 3
      %s281 = smul.addr %s280, 8
      %s282 = scalar_lea.vmem %s4, %s281
      // Predicated region
      $region37: #{upblock_forward.4} parent=35 // pred_check
        %p283 = pneg %p123
      $region38: #{upblock_forward.4} parent=35 // pred_check_branch
        %285 = sbr.rel (%p283) target = $region40
      $region39: #{upblock_forward.4} parent=35 // pred_region
        %s286 = smul.u32 2, %s16
      $region40: #{upblock_forward.4} parent=35 // pred_fallthru
        _
    $region36: #{upblock_forward.4} parent=5 // pred_fallthru
      _
    %p287 = scmp.le.s32.totalorder 2, %s11
    // Predicated region
    $region41: #{upblock_forward.4} parent=5 // pred_check
      %p288 = pneg %p287
    $region42: #{upblock_forward.4} parent=5 // pred_check_branch
      %290 = sbr.rel (%p288) target = $region44
    $region43: #{upblock_forward.4} parent=5 // pred_region
      %s291 = ssub.s32 %s11, 2
      // Predicated region
      $region45: #{upblock_forward.4} parent=43 // pred_check
        %p292 = pneg %p129
      $region46: #{upblock_forward.4} parent=43 // pred_check_branch
        %294 = sbr.rel (%p292) target = $region48
      $region47: #{upblock_forward.4} parent=43 // pred_region
        %s295 = smul.u32 2, %s17
        %p296 = scmp.lt.s32.totalorder %s295, 3
        %s297 = scalar_select %p296, %s295, 3
        %s298 = smul.addr %s297, 8
        %s299 = scalar_lea.vmem %s4, %s298
      $region48: #{upblock_forward.4} parent=43 // pred_fallthru
        _
    $region44: #{upblock_forward.4} parent=5 // pred_fallthru
      _
  $region6: #{upblock_forward.4} parent=0 // loop_footer
    %s15 = sadd.s32 1, %s11
  $region7: #{upblock_forward.4} parent=0 // loop_footer_branch
    %10 = sbr.rel target = $region3
  $region8: #{upblock_forward.4} parent=0 // loop_exit
    _

// kernel: upblock_forward.5
$region0: #{upblock_forward.5}
  #allocation0 [shape = 'u32[]', space=smem, size = 0x4, offset = 0x4, fixed_abs, tag = 'smem constant byte address 0x4 - core index']
  #allocation1 [shape = 'u32[144,128]{1,0:T(1,128)}', space=vmem, size = 0x12000, scoped, tag = 'internal scratch']
  #allocation2 [shape = 'f32[1]{0:T(128)S(6)}', space=smem, size = 0x200, scoped, tag = 'scoped memory for upblock_forward.5']
  %s0 = inlined_call_operand.vmem [shape: bf16[640,32], index: 0, kind: input, shape index: {}]
  %s1 = inlined_call_operand.vmem [shape: bf16[32,128], index: 1, kind: input, shape index: {}]
  %s2 = inlined_call_operand.<no memory space> [shape: f32[1], index: 2, kind: input, shape index: {}]
  %s3 = inlined_call_operand.vmem [shape: f32[640,128], index: 3, kind: output, shape index: {}]
  %s4 = sld [smem:[#allocation0]]
  $region45: #{upblock_forward.5} parent=0
    _
  %s6 = ssub.s32 1, %s4
  %s7 = scalar_select 0, %s6, %s4
  %8 = sst [smem:[#allocation2]] %s2
  loop: start=0, step=1, limit=7
  $region2: #{upblock_forward.5} parent=0 // loop_pre_header
    _
  $region3: #{upblock_forward.5} parent=0 // loop_header
    %s10 = sphi 0, %s14
    %p11 = scmp.ge.s32.totalorder %s10, 7
    %s20 = sphi 0, %s22
    %s23 = sphi 0, %s20
    %s24 = sphi 0, %s23
    %s40 = sphi 0, %s24
    %s44 = sphi 0, %s44
    %s46 = sphi 0, %s44
    %s47 = sphi 0, %s46
    %s61 = sphi 0, %s47
    %s65 = sphi 0, %s65
    %s67 = sphi 0, %s65
    %s68 = sphi 0, %s67
    %s82 = sphi 0, %s68
    %s88 = sphi 0, %s90
    %s91 = sphi 0, %s88
    %s92 = sphi 0, %s91
    %s108 = sphi 0, %s92
  $region4: #{upblock_forward.5} parent=0 // loop_header_branch
    %13 = sbr.rel (%p11) target = $region8
  $region5: #{upblock_forward.5} parent=0 // loop_body
    %s15 = ssub.s32 %s10, 1
    %s16 = ssub.s32 %s10, 2
    %s17 = sadd.s32 %s10, 1
    %s18 = ssub.s32 %s10, %s17
    %p19 = scmp.eq.s32.totalorder %s18, 0
    %s21 = sadd.s32 %s20, 1
    %s22 = scalar_select %p19, %s20, %s21
    %p25 = pneg %p19
    %p26 = scmp.eq.s32.totalorder %s10, 4
    %p27 = por %p25, %p26
    %p28 = scmp.ne.s32.totalorder %s20, %s23
    %p29 = scmp.eq.s32.totalorder %s10, 0
    %p30 = por %p28, %p29
    %p31 = scmp.ne.s32.totalorder %s20, %s23
    %p32 = scmp.eq.s32.totalorder %s15, 4
    %p33 = por %p31, %p32
    %p34 = scmp.ne.s32.totalorder %s23, %s24
    %p35 = scmp.eq.s32.totalorder %s15, 0
    %p36 = por %p34, %p35
    %p37 = scmp.ne.s32.totalorder %s23, %s24
    %p38 = scmp.eq.s32.totalorder %s16, 4
    %p39 = por %p37, %p38
    %p41 = scmp.ne.s32.totalorder %s24, %s40
    %p42 = scmp.eq.s32.totalorder %s16, 0
    %p43 = por %p41, %p42
    %s45 = sadd.s32 %s44, 1
    %p48 = scmp.eq.s32.totalorder %s10, 4
    %p49 = scmp.ne.s32.totalorder %s44, %s46
    %p50 = scmp.eq.s32.totalorder %s10, 0
    %p51 = por %p49, %p50
    %p52 = scmp.ne.s32.totalorder %s44, %s46
    %p53 = scmp.eq.s32.totalorder %s15, 4
    %p54 = por %p52, %p53
    %p55 = scmp.ne.s32.totalorder %s46, %s47
    %p56 = scmp.eq.s32.totalorder %s15, 0
    %p57 = por %p55, %p56
    %p58 = scmp.ne.s32.totalorder %s46, %s47
    %p59 = scmp.eq.s32.totalorder %s16, 4
    %p60 = por %p58, %p59
    %p62 = scmp.ne.s32.totalorder %s47, %s61
    %p63 = scmp.eq.s32.totalorder %s16, 0
    %p64 = por %p62, %p63
    %s66 = sadd.s32 %s65, 1
    %p69 = scmp.eq.s32.totalorder %s10, 4
    %p70 = scmp.ne.s32.totalorder %s65, %s67
    %p71 = scmp.eq.s32.totalorder %s10, 0
    %p72 = por %p70, %p71
    %p73 = scmp.ne.s32.totalorder %s65, %s67
    %p74 = scmp.eq.s32.totalorder %s15, 4
    %p75 = por %p73, %p74
    %p76 = scmp.ne.s32.totalorder %s67, %s68
    %p77 = scmp.eq.s32.totalorder %s15, 0
    %p78 = por %p76, %p77
    %p79 = scmp.ne.s32.totalorder %s67, %s68
    %p80 = scmp.eq.s32.totalorder %s16, 4
    %p81 = por %p79, %p80
    %p83 = scmp.ne.s32.totalorder %s68, %s82
    %p84 = scmp.eq.s32.totalorder %s16, 0
    %p85 = por %p83, %p84
    %s86 = ssub.s32 %s10, %s17
    %p87 = scmp.eq.s32.totalorder %s86, 0
    %s89 = sadd.s32 %s88, 1
    %s90 = scalar_select %p87, %s88, %s89
    %p93 = pneg %p87
    %p94 = scmp.eq.s32.totalorder %s10, 4
    %p95 = por %p93, %p94
    %p96 = scmp.ne.s32.totalorder %s88, %s91
    %p97 = scmp.eq.s32.totalorder %s10, 0
    %p98 = por %p96, %p97
    %p99 = scmp.ne.s32.totalorder %s88, %s91
    %p100 = scmp.eq.s32.totalorder %s15, 4
    %p101 = por %p99, %p100
    %p102 = scmp.ne.s32.totalorder %s91, %s92
    %p103 = scmp.eq.s32.totalorder %s15, 0
    %p104 = por %p102, %p103
    %p105 = scmp.ne.s32.totalorder %s91, %s92
    %p106 = scmp.eq.s32.totalorder %s16, 4
    %p107 = por %p105, %p106
    %p109 = scmp.ne.s32.totalorder %s92, %s108
    %p110 = scmp.eq.s32.totalorder %s16, 0
    %p111 = por %p109, %p110
    %p112 = scmp.le.s32.totalorder 1, %s10
    %p113 = scmp.lt.s32.totalorder %s10, 6
    %p114 = pnand %p112, %p113
    %p115 = pneg %p114
    // Predicated region
    $region9: #{upblock_forward.5} parent=5 // pred_check
      _
    $region10: #{upblock_forward.5} parent=5 // pred_check_branch
      %117 = sbr.rel (%p114) target = $region12
    $region11: #{upblock_forward.5} parent=5 // pred_region
      %s118 = ssub.s32 %s10, 1
      // Predicated region
      $region13: #{upblock_forward.5} parent=11 // pred_check
        %p119 = pneg %p57
      $region14: #{upblock_forward.5} parent=11 // pred_check_branch
        %121 = sbr.rel (%p119) target = $region16
      $region15: #{upblock_forward.5} parent=11 // pred_region
        _
      $region16: #{upblock_forward.5} parent=11 // pred_fallthru
        _
      // Predicated region
      $region17: #{upblock_forward.5} parent=11 // pred_check
        %p122 = pneg %p78
      $region18: #{upblock_forward.5} parent=11 // pred_check_branch
        %124 = sbr.rel (%p122) target = $region20
      $region19: #{upblock_forward.5} parent=11 // pred_region
        _
      $region20: #{upblock_forward.5} parent=11 // pred_fallthru
        _
    $region12: #{upblock_forward.5} parent=5 // pred_fallthru
      _
    %p125 = scmp.lt.s32.totalorder %s10, 5
    // Predicated region
    $region21: #{upblock_forward.5} parent=5 // pred_check
      %p126 = pneg %p125
    $region22: #{upblock_forward.5} parent=5 // pred_check_branch
      %128 = sbr.rel (%p126) target = $region24
    $region23: #{upblock_forward.5} parent=5 // pred_region
      // Predicated region
      $region25: #{upblock_forward.5} parent=23 // pred_check
        %p129 = pneg %p30
      $region26: #{upblock_forward.5} parent=23 // pred_check_branch
        %131 = sbr.rel (%p129) target = $region28
      $region27: #{upblock_forward.5} parent=23 // pred_region
        %s132 = smul.u32 16, %s10
        %p133 = scmp.lt.s32.totalorder %s132, 79
        %s134 = scalar_select %p133, %s132, 79
        %s135 = smul.addr %s134, 4
        %s136 = scalar_lea.vmem %s0, %s135
        %s137 = smul.u32 16, %s10
      $region28: #{upblock_forward.5} parent=23 // pred_fallthru
        _
    $region24: #{upblock_forward.5} parent=5 // pred_fallthru
      _
    %p138 = scmp.le.s32.totalorder 1, %s10
    %p139 = scmp.lt.s32.totalorder %s10, 6
    %p140 = pnand %p138, %p139
    %p141 = pneg %p140
    // Predicated region
    $region29: #{upblock_forward.5} parent=5 // pred_check
      _
    $region30: #{upblock_forward.5} parent=5 // pred_check_branch
      %143 = sbr.rel (%p140) target = $region32
    $region31: #{upblock_forward.5} parent=5 // pred_region
      %s144 = ssub.s32 %s10, 1
      %s145 = smul.u32 16, %s15
      %p146 = scmp.lt.s32.totalorder %s145, 79
      %s147 = scalar_select %p146, %s145, 79
      %s148 = smul.addr %s147, 4
      %s149 = scalar_lea.vmem %s0, %s148
      %p150 = pneg %p36
      %p151 = pneg %p33
      %p152 = pneg %p57
      %p153 = pneg %p54
      %p154 = pneg %p78
      %p155 = pneg %p75
      %p156 = pneg %p104
      %p157 = pneg %p101
      %s158 = smul.u32 16, %s15
      %p159 = scmp.lt.s32.totalorder %s158, 79
      %s160 = scalar_select %p159, %s158, 79
      %s161 = smul.addr %s160, 8
      %s162 = scalar_lea.vmem %s3, %s161
      %s163 = smul.u32 16, %s15
      %p164 = scmp.lt.s32.totalorder %s163, 79
      %s165 = scalar_select %p164, %s163, 79
      %s166 = smul.addr %s165, 4
      %s167 = scalar_lea.vmem %s0, %s166
      %s168 = smul.u32 16, %s15
      %s169 = smul.u32 16, %s15
      %p170 = scmp.lt.s32.totalorder %s169, 79
      %s171 = scalar_select %p170, %s169, 79
      %s172 = smul.addr %s171, 8
      %s173 = scalar_lea.vmem %s3, %s172
      %s174 = smul.u32 16, %s15
      %v176 = vld [vmem:[%s167] sm:$0xf]
      %v177 = vld [vmem:[%s167 + $0x4] sm:$0xf]
      %v178 = vld [vmem:[%s167 + $0x8] sm:$0xf]
      %v179 = vld [vmem:[%s167 + $0xc] sm:$0xf]
      %v180 = vld [vmem:[%s167 + $0x10] sm:$0xf]
      %v181 = vld [vmem:[%s167 + $0x14] sm:$0xf]
      %v182 = vld [vmem:[%s167 + $0x18] sm:$0xf]
      %v183 = vld [vmem:[%s167 + $0x1c] sm:$0xf]
      %v184 = vld [vmem:[%s167 + $0x20] sm:$0xf]
      %v185 = vld [vmem:[%s167 + $0x24] sm:$0xf]
      %v186 = vld [vmem:[%s167 + $0x28] sm:$0xf]
      %v187 = vld [vmem:[%s167 + $0x2c] sm:$0xf]
      %v188 = vld [vmem:[%s167 + $0x30] sm:$0xf]
      %v189 = vld [vmem:[%s167 + $0x34] sm:$0xf]
      %v190 = vld [vmem:[%s167 + $0x38] sm:$0xf]
      %v191 = vld [vmem:[%s167 + $0x3c] sm:$0xf]
      %v192 = vld [vmem:[%s1] sm:$0xf]
      %v193 = vld [vmem:[%s1 + $0x4] sm:$0xf]
      %v194 = vld [vmem:[%s1 + $0x8] sm:$0xf]
      %v195 = vld [vmem:[%s1 + $0xc] sm:$0xf]
      %v212 = vunpack.c.l.b16 %v176
      %v213 = vunpack.c.l.b16 %v177
      %v214 = vunpack.c.l.b16 %v178
      %v215 = vunpack.c.l.b16 %v179
      %v216 = vunpack.c.l.b16 %v180
      %v217 = vunpack.c.l.b16 %v181
      %v218 = vunpack.c.l.b16 %v182
      %v219 = vunpack.c.l.b16 %v183
      %v220 = vunpack.c.l.b16 %v184
      %v221 = vunpack.c.l.b16 %v185
      %v222 = vunpack.c.l.b16 %v186
      %v223 = vunpack.c.l.b16 %v187
      %v224 = vunpack.c.l.b16 %v188
      %v225 = vunpack.c.l.b16 %v189
      %v226 = vunpack.c.l.b16 %v190
      %v227 = vunpack.c.l.b16 %v191
      %v228 = vpack.c.b16 %v213, %v212
      %v229 = vpack.c.b16 %v215, %v214
      %v230 = vpack.c.b16 %v217, %v216
      %v231 = vpack.c.b16 %v219, %v218
      %v232 = vpack.c.b16 %v221, %v220
      %v233 = vpack.c.b16 %v223, %v222
      %v234 = vpack.c.b16 %v225, %v224
      %v235 = vpack.c.b16 %v227, %v226
      %v240 = vunpack.c.l.b16 %v192
      %v241 = vunpack.c.l.b16 %v193
      %v242 = vunpack.c.l.b16 %v194
      %v243 = vunpack.c.l.b16 %v195
      %v244 = vpack.c.b16 %v241, %v240
      %v245 = vpack.c.b16 %v243, %v242
      %vm248 = vcmask 261120
      %v250 = vsel %vm248, %v228, 0
      %v253 = vsel %vm248, %v229, 0
      %v256 = vsel %vm248, %v230, 0
      %v259 = vsel %vm248, %v231, 0
      %v262 = vsel %vm248, %v232, 0
      %v265 = vsel %vm248, %v233, 0
      %v268 = vsel %vm248, %v234, 0
      %v271 = vsel %vm248, %v235, 0
      %273 = vmatprep.subr.bf16.mxu0 0
      %274 = vmatpush1.bf16.msra.mxu0 %v244
      %275 = vmatprep.subr.bf16.mxu0 0
      %276 = vmatpush1.bf16.msra.mxu0 %v245
      %277 = vmatprep.subr.bf16.mxu0 0
      %278 = vmatpush1.bf16.msra.mxu0 0
      %279 = vmatprep.subr.bf16.mxu0 0
      %280 = vmatpush1.bf16.msra.mxu0 0
      %281 = vmatprep.subr.bf16.mxu0 0
      %282 = vmatpush1.bf16.msra.mxu0 0
      %283 = vmatprep.subr.bf16.mxu0 0
      %284 = vmatpush1.bf16.msra.mxu0 0
      %285 = vmatprep.subr.bf16.mxu0 0
      %286 = vmatpush1.bf16.msra.mxu0 0
      %287 = vmatprep.subr.bf16.mxu0 0
      %288 = vmatpush1.bf16.msra.mxu0 0
      %289 = vmatprep.subr.bf16.mxu0 0
      %290 = vmatpush1.bf16.msra.mxu0 0
      %291 = vmatprep.subr.bf16.mxu0 0
      %292 = vmatpush1.bf16.msra.mxu0 0
      %293 = vmatprep.subr.bf16.mxu0 0
      %294 = vmatpush1.bf16.msra.mxu0 0
      %295 = vmatprep.subr.bf16.mxu0 0
      %296 = vmatpush1.bf16.msra.mxu0 0
      %297 = vmatprep.subr.bf16.mxu0 0
      %298 = vmatpush1.bf16.msra.mxu0 0
      %299 = vmatprep.subr.bf16.mxu0 0
      %300 = vmatpush1.bf16.msra.mxu0 0
      %301 = vmatprep.subr.bf16.mxu0 0
      %302 = vmatpush1.bf16.msra.mxu0 0
      %303 = vmatprep.subr.bf16.mxu0 0
      %304 = vmatpush1.bf16.msra.mxu0 0
      %305 = vmatprep.mubr.bf16.mxu0 0
      %306 = vmatmul.mubr.bf16.gmra.mrb[0].mxu0 %v250
      %v307 = vpop.f32.mrb[0].mxu0
      %v308 = vadd.f32 0.0, %v307
      %v309 = vpop.f32.mrb[0].mxu0
      %v310 = vpop.f32.mrb[0].mxu0
      %v311 = vadd.f32 0.0, %v310
      %v312 = vpop.f32.mrb[0].mxu0
      %313 = vmatprep.mubr.bf16.mxu0 0
      %314 = vmatmul.mubr.bf16.gmra.mrb[0].mxu0 %v253
      %v315 = vpop.f32.mrb[0].mxu0
      %v316 = vadd.f32 0.0, %v315
      %v317 = vpop.f32.mrb[0].mxu0
      %v318 = vpop.f32.mrb[0].mxu0
      %v319 = vadd.f32 0.0, %v318
      %v320 = vpop.f32.mrb[0].mxu0
      %321 = vmatprep.mubr.bf16.mxu0 0
      %322 = vmatmul.mubr.bf16.gmra.mrb[0].mxu0 %v256
      %v323 = vpop.f32.mrb[0].mxu0
      %v324 = vadd.f32 0.0, %v323
      %v325 = vpop.f32.mrb[0].mxu0
      %v326 = vpop.f32.mrb[0].mxu0
      %v327 = vadd.f32 0.0, %v326
      %v328 = vpop.f32.mrb[0].mxu0
      %329 = vmatprep.mubr.bf16.mxu0 0
      %330 = vmatmul.mubr.bf16.gmra.mrb[0].mxu0 %v259
      %v331 = vpop.f32.mrb[0].mxu0
      %v332 = vadd.f32 0.0, %v331
      %v333 = vpop.f32.mrb[0].mxu0
      %v334 = vpop.f32.mrb[0].mxu0
      %v335 = vadd.f32 0.0, %v334
      %v336 = vpop.f32.mrb[0].mxu0
      %337 = vmatprep.mubr.bf16.mxu0 0
      %338 = vmatmul.mubr.bf16.gmra.mrb[0].mxu0 %v262
      %v339 = vpop.f32.mrb[0].mxu0
      %v340 = vadd.f32 0.0, %v339
      %v341 = vpop.f32.mrb[0].mxu0
      %v342 = vpop.f32.mrb[0].mxu0
      %v343 = vadd.f32 0.0, %v342
      %v344 = vpop.f32.mrb[0].mxu0
      %345 = vmatprep.mubr.bf16.mxu0 0
      %346 = vmatmul.mubr.bf16.gmra.mrb[0].mxu0 %v265
      %v347 = vpop.f32.mrb[0].mxu0
      %v348 = vadd.f32 0.0, %v347
      %v349 = vpop.f32.mrb[0].mxu0
      %v350 = vpop.f32.mrb[0].mxu0
      %v351 = vadd.f32 0.0, %v350
      %v352 = vpop.f32.mrb[0].mxu0
      %353 = vmatprep.mubr.bf16.mxu0 0
      %354 = vmatmul.mubr.bf16.gmra.mrb[0].mxu0 %v268
      %v355 = vpop.f32.mrb[0].mxu0
      %v356 = vadd.f32 0.0, %v355
      %v357 = vpop.f32.mrb[0].mxu0
      %v358 = vpop.f32.mrb[0].mxu0
      %v359 = vadd.f32 0.0, %v358
      %v360 = vpop.f32.mrb[0].mxu0
      %361 = vmatprep.mubr.bf16.mxu0 0
      %362 = vmatmul.mubr.bf16.gmra.mrb[0].mxu0 %v271
      %v363 = vpop.f32.mrb[0].mxu0
      %v364 = vadd.f32 0.0, %v363
      %v365 = vpop.f32.mrb[0].mxu0
      %v366 = vpop.f32.mrb[0].mxu0
      %v367 = vadd.f32 0.0, %v366
      %v368 = vpop.f32.mrb[0].mxu0
      %369 = vdwg.mxu0
      %s370 = sld [smem:[#allocation2]]
      %vm371 = vcmp.ge.f32.partialorder %v308, 0.0
      %vm372 = vcmp.ge.f32.partialorder %v311, 0.0
      %vm373 = vcmp.ge.f32.partialorder %v316, 0.0
      %vm374 = vcmp.ge.f32.partialorder %v319, 0.0
      %vm375 = vcmp.ge.f32.partialorder %v324, 0.0
      %vm376 = vcmp.ge.f32.partialorder %v327, 0.0
      %vm377 = vcmp.ge.f32.partialorder %v332, 0.0
      %vm378 = vcmp.ge.f32.partialorder %v335, 0.0
      %vm379 = vcmp.ge.f32.partialorder %v340, 0.0
      %vm380 = vcmp.ge.f32.partialorder %v343, 0.0
      %vm381 = vcmp.ge.f32.partialorder %v348, 0.0
      %vm382 = vcmp.ge.f32.partialorder %v351, 0.0
      %vm383 = vcmp.ge.f32.partialorder %v356, 0.0
      %vm384 = vcmp.ge.f32.partialorder %v359, 0.0
      %vm385 = vcmp.ge.f32.partialorder %v364, 0.0
      %vm386 = vcmp.ge.f32.partialorder %v367, 0.0
      %v387 = vstv %s370
      %v388 = vmul.f32 %v387, %v308
      %v389 = vmul.f32 %v387, %v311
      %v390 = vmul.f32 %v387, %v316
      %v391 = vmul.f32 %v387, %v319
      %v392 = vmul.f32 %v387, %v324
      %v393 = vmul.f32 %v387, %v327
      %v394 = vmul.f32 %v387, %v332
      %v395 = vmul.f32 %v387, %v335
      %v396 = vmul.f32 %v387, %v340
      %v397 = vmul.f32 %v387, %v343
      %v398 = vmul.f32 %v387, %v348
      %v399 = vmul.f32 %v387, %v351
      %v400 = vmul.f32 %v387, %v356
      %v401 = vmul.f32 %v387, %v359
      %v402 = vmul.f32 %v387, %v364
      %v403 = vmul.f32 %v387, %v367
      %v404 = vsel %vm371, %v308, %v388
      %v405 = vsel %vm372, %v311, %v389
      %v406 = vsel %vm373, %v316, %v390
      %v407 = vsel %vm374, %v319, %v391
      %v408 = vsel %vm375, %v324, %v392
      %v409 = vsel %vm376, %v327, %v393
      %v410 = vsel %vm377, %v332, %v394
      %v411 = vsel %vm378, %v335, %v395
      %v412 = vsel %vm379, %v340, %v396
      %v413 = vsel %vm380, %v343, %v397
      %v414 = vsel %vm381, %v348, %v398
      %v415 = vsel %vm382, %v351, %v399
      %v416 = vsel %vm383, %v356, %v400
      %v417 = vsel %vm384, %v359, %v401
      %v418 = vsel %vm385, %v364, %v402
      %v419 = vsel %vm386, %v367, %v403
      %420 = vst [vmem:[%s173] sm:$0xff] %v404
      %421 = vst [vmem:[%s173 + $0x8] sm:$0xff] %v405
      %422 = vst [vmem:[%s173 + $0x10] sm:$0xff] %v406
      %423 = vst [vmem:[%s173 + $0x18] sm:$0xff] %v407
      %424 = vst [vmem:[%s173 + $0x20] sm:$0xff] %v408
      %425 = vst [vmem:[%s173 + $0x28] sm:$0xff] %v409
      %426 = vst [vmem:[%s173 + $0x30] sm:$0xff] %v410
      %427 = vst [vmem:[%s173 + $0x38] sm:$0xff] %v411
      %428 = vst [vmem:[%s173 + $0x40] sm:$0xff] %v412
      %429 = vst [vmem:[%s173 + $0x48] sm:$0xff] %v413
      %430 = vst [vmem:[%s173 + $0x50] sm:$0xff] %v414
      %431 = vst [vmem:[%s173 + $0x58] sm:$0xff] %v415
      %432 = vst [vmem:[%s173 + $0x60] sm:$0xff] %v416
      %433 = vst [vmem:[%s173 + $0x68] sm:$0xff] %v417
      %434 = vst [vmem:[%s173 + $0x70] sm:$0xff] %v418
      %435 = vst [vmem:[%s173 + $0x78] sm:$0xff] %v419
      %s436 = smul.u32 16, %s15
      %p437 = scmp.lt.s32.totalorder %s436, 79
      %s438 = scalar_select %p437, %s436, 79
      %s439 = smul.addr %s438, 8
      %s440 = scalar_lea.vmem %s3, %s439
      // Predicated region
      $region33: #{upblock_forward.5} parent=31 // pred_check
        %p441 = pneg %p101
      $region34: #{upblock_forward.5} parent=31 // pred_check_branch
        %443 = sbr.rel (%p441) target = $region36
      $region35: #{upblock_forward.5} parent=31 // pred_region
        %s444 = smul.u32 16, %s15
      $region36: #{upblock_forward.5} parent=31 // pred_fallthru
        _
    $region32: #{upblock_forward.5} parent=5 // pred_fallthru
      _
    %p445 = scmp.le.s32.totalorder 2, %s10
    // Predicated region
    $region37: #{upblock_forward.5} parent=5 // pred_check
      %p446 = pneg %p445
    $region38: #{upblock_forward.5} parent=5 // pred_check_branch
      %448 = sbr.rel (%p446) target = $region40
    $region39: #{upblock_forward.5} parent=5 // pred_region
      %s449 = ssub.s32 %s10, 2
      // Predicated region
      $region41: #{upblock_forward.5} parent=39 // pred_check
        %p450 = pneg %p107
      $region42: #{upblock_forward.5} parent=39 // pred_check_branch
        %452 = sbr.rel (%p450) target = $region44
      $region43: #{upblock_forward.5} parent=39 // pred_region
        %s453 = smul.u32 16, %s16
        %p454 = scmp.lt.s32.totalorder %s453, 79
        %s455 = scalar_select %p454, %s453, 79
        %s456 = smul.addr %s455, 8
        %s457 = scalar_lea.vmem %s3, %s456
      $region44: #{upblock_forward.5} parent=39 // pred_fallthru
        _
    $region40: #{upblock_forward.5} parent=5 // pred_fallthru
      _
  $region6: #{upblock_forward.5} parent=0 // loop_footer
    %s14 = sadd.s32 1, %s10
  $region7: #{upblock_forward.5} parent=0 // loop_footer_branch
    %9 = sbr.rel target = $region3
  $region8: #{upblock_forward.5} parent=0 // loop_exit
    _

// kernel: upblock_forward.6
$region0: #{upblock_forward.6}
  #allocation0 [shape = 'u32[]', space=smem, size = 0x4, offset = 0x4, fixed_abs, tag = 'smem constant byte address 0x4 - core index']
  #allocation1 [shape = 'u32[144,128]{1,0:T(1,128)}', space=vmem, size = 0x12000, scoped, tag = 'internal scratch']
  #allocation2 [shape = 'f32[1]{0:T(128)S(6)}', space=smem, size = 0x200, scoped, tag = 'scoped memory for upblock_forward.6']
  %s0 = inlined_call_operand.vmem [shape: bf16[8,512], index: 0, kind: input, shape index: {}]
  %s1 = inlined_call_operand.vmem [shape: bf16[512,512], index: 1, kind: input, shape index: {}]
  %s2 = inlined_call_operand.<no memory space> [shape: f32[1], index: 2, kind: input, shape index: {}]
  %s3 = inlined_call_operand.vmem [shape: f32[8,512], index: 3, kind: input, shape index: {}]
  %s4 = inlined_call_operand.vmem [shape: f32[8,512], index: 4, kind: output, shape index: {}]
  %s5 = sld [smem:[#allocation0]]
  $region87: #{upblock_forward.6} parent=0
    _
  %s7 = ssub.s32 1, %s5
  %s8 = scalar_select 0, %s7, %s5
  %9 = sst [smem:[#allocation2]] %s2
  $region1: #{upblock_forward.6} parent=0
    #allocation3 [shape = 'u8[524288]{0}', space=vmem, size = 0x80000, scoped, tag = 'input window, operand 1']
    loop: start=0, step=1, limit=4
    $region2: #{upblock_forward.6} parent=1 // loop_pre_header
      _
    $region3: #{upblock_forward.6} parent=1 // loop_header
      %s11 = sphi 0, %s15
      %p12 = scmp.ge.s32.totalorder %s11, 4
      %s19 = sphi 0, %s19
      %s21 = sphi 0, %s19
      %s22 = sphi 0, %s21
      %s36 = sphi 0, %s22
      %s42 = sphi 0, %s44
      %s45 = sphi 0, %s42
      %s46 = sphi 0, %s45
      %s62 = sphi 0, %s46
      %s66 = sphi 0, %s66
      %s68 = sphi 0, %s66
      %s69 = sphi 0, %s68
      %s83 = sphi 0, %s69
      %s89 = sphi 0, %s91
      %s92 = sphi 0, %s89
      %s93 = sphi 0, %s92
      %s109 = sphi 0, %s93
      %s115 = sphi 0, %s117
      %s118 = sphi 0, %s115
      %s119 = sphi 0, %s118
      %s135 = sphi 0, %s119
    $region4: #{upblock_forward.6} parent=1 // loop_header_branch
      %14 = sbr.rel (%p12) target = $region8
    $region5: #{upblock_forward.6} parent=1 // loop_body
      %s16 = ssub.s32 %s11, 1
      %s17 = ssub.s32 %s11, 2
      %s18 = sadd.s32 %s11, 1
      %s20 = sadd.s32 %s19, 1
      %p23 = scmp.eq.s32.totalorder %s11, 1
      %p24 = scmp.ne.s32.totalorder %s19, %s21
      %p25 = scmp.eq.s32.totalorder %s11, 0
      %p26 = por %p24, %p25
      %p27 = scmp.ne.s32.totalorder %s19, %s21
      %p28 = scmp.eq.s32.totalorder %s16, 1
      %p29 = por %p27, %p28
      %p30 = scmp.ne.s32.totalorder %s21, %s22
      %p31 = scmp.eq.s32.totalorder %s16, 0
      %p32 = por %p30, %p31
      %p33 = scmp.ne.s32.totalorder %s21, %s22
      %p34 = scmp.eq.s32.totalorder %s17, 1
      %p35 = por %p33, %p34
      %p37 = scmp.ne.s32.totalorder %s22, %s36
      %p38 = scmp.eq.s32.totalorder %s17, 0
      %p39 = por %p37, %p38
      %s40 = ssub.s32 %s11, %s18
      %p41 = scmp.eq.s32.totalorder %s40, 0
      %s43 = sadd.s32 %s42, 1
      %s44 = scalar_select %p41, %s42, %s43
      %p47 = pneg %p41
      %p48 = scmp.eq.s32.totalorder %s11, 1
      %p49 = por %p47, %p48
      %p50 = scmp.ne.s32.totalorder %s42, %s45
      %p51 = scmp.eq.s32.totalorder %s11, 0
      %p52 = por %p50, %p51
      %p53 = scmp.ne.s32.totalorder %s42, %s45
      %p54 = scmp.eq.s32.totalorder %s16, 1
      %p55 = por %p53, %p54
      %p56 = scmp.ne.s32.totalorder %s45, %s46
      %p57 = scmp.eq.s32.totalorder %s16, 0
      %p58 = por %p56, %p57
      %p59 = scmp.ne.s32.totalorder %s45, %s46
      %p60 = scmp.eq.s32.totalorder %s17, 1
      %p61 = por %p59, %p60
      %p63 = scmp.ne.s32.totalorder %s46, %s62
      %p64 = scmp.eq.s32.totalorder %s17, 0
      %p65 = por %p63, %p64
      %s67 = sadd.s32 %s66, 1
      %p70 = scmp.eq.s32.totalorder %s11, 1
      %p71 = scmp.ne.s32.totalorder %s66, %s68
      %p72 = scmp.eq.s32.totalorder %s11, 0
      %p73 = por %p71, %p72
      %p74 = scmp.ne.s32.totalorder %s66, %s68
      %p75 = scmp.eq.s32.totalorder %s16, 1
      %p76 = por %p74, %p75
      %p77 = scmp.ne.s32.totalorder %s68, %s69
      %p78 = scmp.eq.s32.totalorder %s16, 0
      %p79 = por %p77, %p78
      %p80 = scmp.ne.s32.totalorder %s68, %s69
      %p81 = scmp.eq.s32.totalorder %s17, 1
      %p82 = por %p80, %p81
      %p84 = scmp.ne.s32.totalorder %s69, %s83
      %p85 = scmp.eq.s32.totalorder %s17, 0
      %p86 = por %p84, %p85
      %s87 = ssub.s32 %s11, %s18
      %p88 = scmp.eq.s32.totalorder %s87, 0
      %s90 = sadd.s32 %s89, 1
      %s91 = scalar_select %p88, %s89, %s90
      %p94 = pneg %p88
      %p95 = scmp.eq.s32.totalorder %s11, 1
      %p96 = por %p94, %p95
      %p97 = scmp.ne.s32.totalorder %s89, %s92
      %p98 = scmp.eq.s32.totalorder %s11, 0
      %p99 = por %p97, %p98
      %p100 = scmp.ne.s32.totalorder %s89, %s92
      %p101 = scmp.eq.s32.totalorder %s16, 1
      %p102 = por %p100, %p101
      %p103 = scmp.ne.s32.totalorder %s92, %s93
      %p104 = scmp.eq.s32.totalorder %s16, 0
      %p105 = por %p103, %p104
      %p106 = scmp.ne.s32.totalorder %s92, %s93
      %p107 = scmp.eq.s32.totalorder %s17, 1
      %p108 = por %p106, %p107
      %p110 = scmp.ne.s32.totalorder %s93, %s109
      %p111 = scmp.eq.s32.totalorder %s17, 0
      %p112 = por %p110, %p111
      %s113 = ssub.s32 %s11, %s18
      %p114 = scmp.eq.s32.totalorder %s113, 0
      %s116 = sadd.s32 %s115, 1
      %s117 = scalar_select %p114, %s115, %s116
      %p120 = pneg %p114
      %p121 = scmp.eq.s32.totalorder %s11, 1
      %p122 = por %p120, %p121
      %p123 = scmp.ne.s32.totalorder %s115, %s118
      %p124 = scmp.eq.s32.totalorder %s11, 0
      %p125 = por %p123, %p124
      %p126 = scmp.ne.s32.totalorder %s115, %s118
      %p127 = scmp.eq.s32.totalorder %s16, 1
      %p128 = por %p126, %p127
      %p129 = scmp.ne.s32.totalorder %s118, %s119
      %p130 = scmp.eq.s32.totalorder %s16, 0
      %p131 = por %p129, %p130
      %p132 = scmp.ne.s32.totalorder %s118, %s119
      %p133 = scmp.eq.s32.totalorder %s17, 1
      %p134 = por %p132, %p133
      %p136 = scmp.ne.s32.totalorder %s119, %s135
      %p137 = scmp.eq.s32.totalorder %s17, 0
      %p138 = por %p136, %p137
      %p139 = scmp.le.s32.totalorder 1, %s11
      %p140 = scmp.lt.s32.totalorder %s11, 3
      %p141 = pnand %p139, %p140
      %p142 = pneg %p141
      // Predicated region
      $region9: #{upblock_forward.6} parent=5 // pred_check
        _
      $region10: #{upblock_forward.6} parent=5 // pred_check_branch
        %144 = sbr.rel (%p141) target = $region12
      $region11: #{upblock_forward.6} parent=5 // pred_region
        %s145 = ssub.s32 %s11, 1
        // Predicated region
        $region13: #{upblock_forward.6} parent=11 // pred_check
          %p146 = pneg %p32
        $region14: #{upblock_forward.6} parent=11 // pred_check_branch
          %148 = sbr.rel (%p146) target = $region16
        $region15: #{upblock_forward.6} parent=11 // pred_region
          _
        $region16: #{upblock_forward.6} parent=11 // pred_fallthru
          _
        // Predicated region
        $region17: #{upblock_forward.6} parent=11 // pred_check
          %p149 = pneg %p79
        $region18: #{upblock_forward.6} parent=11 // pred_check_branch
          %151 = sbr.rel (%p149) target = $region20
        $region19: #{upblock_forward.6} parent=11 // pred_region
          _
        $region20: #{upblock_forward.6} parent=11 // pred_fallthru
          _
      $region12: #{upblock_forward.6} parent=5 // pred_fallthru
        _
      %p152 = scmp.lt.s32.totalorder %s11, 2
      // Predicated region
      $region21: #{upblock_forward.6} parent=5 // pred_check
        %p153 = pneg %p152
      $region22: #{upblock_forward.6} parent=5 // pred_check_branch
        %155 = sbr.rel (%p153) target = $region24
      $region23: #{upblock_forward.6} parent=5 // pred_region
        // Predicated region
        $region25: #{upblock_forward.6} parent=23 // pred_check
          %p156 = pneg %p52
        $region26: #{upblock_forward.6} parent=23 // pred_check_branch
          %158 = sbr.rel (%p156) target = $region28
        $region27: #{upblock_forward.6} parent=23 // pred_region
          %s159 = sand.u32 %s42, 1
          %s160 = sand.u32 %s42, 1
          %s161 = smul.addr %s160, 512
          %s162 = scalar_lea.vmem [#allocation3], %s161
          %s163 = smul.u32 2, %s11
          %s164 = smul.addr %s163, 4
          %s165 = scalar_lea.vmem %s1, %s164
          // Predicated region
          $region29: #{upblock_forward.6} parent=27 // pred_check
            _
          $region30: #{upblock_forward.6} parent=27 // pred_check_branch
            %167 = sbr.rel (0) target = $region32
          $region31: #{upblock_forward.6} parent=27 // pred_region
            // Predicated region
            $region33: #{upblock_forward.6} parent=31 // pred_check
              _
            $region34: #{upblock_forward.6} parent=31 // pred_check_branch
              %169 = sbr.rel (0) target = $region36
            $region35: #{upblock_forward.6} parent=31 // pred_region
              // Predicated region
              $region48: #{upblock_forward.6} parent=35 // pred_check
                _
              $region49: #{upblock_forward.6} parent=35 // pred_check_branch
                %310 = sbr.rel (0) target = $region51
              $region50: #{upblock_forward.6} parent=35 // pred_region
                loop: start=0, step=1, limit=1
                $region52: #{upblock_forward.6} parent=50 // loop_pre_header
                  _
                $region53: #{upblock_forward.6} parent=50 // loop_header
                  %s312 = sphi 0, %s316
                  %p313 = scmp.ge.s32.totalorder %s312, 1
                  %s317 = sphi %s165, %s165
                  %s318 = sphi %s162, %s162
                $region54: #{upblock_forward.6} parent=50 // loop_header_branch
                  %315 = sbr.rel (%p313) target = $region58
                $region55: #{upblock_forward.6} parent=50 // loop_body
                  %v319 = vld [vmem:[%s317] sm:$0xff]
                  %320 = vst [vmem:[%s318] sm:$0xff] %v319
                  %v321 = vld [vmem:[%s317 + $0x10] sm:$0xff]
                  %322 = vst [vmem:[%s318 + $0x8] sm:$0xff] %v321
                  %v323 = vld [vmem:[%s317 + $0x20] sm:$0xff]
                  %324 = vst [vmem:[%s318 + $0x10] sm:$0xff] %v323
                  %v325 = vld [vmem:[%s317 + $0x30] sm:$0xff]
                  %326 = vst [vmem:[%s318 + $0x18] sm:$0xff] %v325
                  %v327 = vld [vmem:[%s317 + $0x40] sm:$0xff]
                  %328 = vst [vmem:[%s318 + $0x20] sm:$0xff] %v327
                  %v329 = vld [vmem:[%s317 + $0x50] sm:$0xff]
                  %330 = vst [vmem:[%s318 + $0x28] sm:$0xff] %v329
                  %v331 = vld [vmem:[%s317 + $0x60] sm:$0xff]
                  %332 = vst [vmem:[%s318 + $0x30] sm:$0xff] %v331
                  %v333 = vld [vmem:[%s317 + $0x70] sm:$0xff]
                  %334 = vst [vmem:[%s318 + $0x38] sm:$0xff] %v333
                  %v335 = vld [vmem:[%s317 + $0x80] sm:$0xff]
                  %336 = vst [vmem:[%s318 + $0x40] sm:$0xff] %v335
                  %v337 = vld [vmem:[%s317 + $0x90] sm:$0xff]
                  %338 = vst [vmem:[%s318 + $0x48] sm:$0xff] %v337
                  %v339 = vld [vmem:[%s317 + $0xa0] sm:$0xff]
                  %340 = vst [vmem:[%s318 + $0x50] sm:$0xff] %v339
                  %v341 = vld [vmem:[%s317 + $0xb0] sm:$0xff]
                  %342 = vst [vmem:[%s318 + $0x58] sm:$0xff] %v341
                  %v343 = vld [vmem:[%s317 + $0xc0] sm:$0xff]
                  %344 = vst [vmem:[%s318 + $0x60] sm:$0xff] %v343
                  %v345 = vld [vmem:[%s317 + $0xd0] sm:$0xff]
                  %346 = vst [vmem:[%s318 + $0x68] sm:$0xff] %v345
                  %v347 = vld [vmem:[%s317 + $0xe0] sm:$0xff]
                  %348 = vst [vmem:[%s318 + $0x70] sm:$0xff] %v347
                  %v349 = vld [vmem:[%s317 + $0xf0] sm:$0xff]
                  %350 = vst [vmem:[%s318 + $0x78] sm:$0xff] %v349
                  %v351 = vld [vmem:[%s317 + $0x100] sm:$0xff]
                  %352 = vst [vmem:[%s318 + $0x80] sm:$0xff] %v351
                  %v353 = vld [vmem:[%s317 + $0x110] sm:$0xff]
                  %354 = vst [vmem:[%s318 + $0x88] sm:$0xff] %v353
                  %v355 = vld [vmem:[%s317 + $0x120] sm:$0xff]
                  %356 = vst [vmem:[%s318 + $0x90] sm:$0xff] %v355
                  %v357 = vld [vmem:[%s317 + $0x130] sm:$0xff]
                  %358 = vst [vmem:[%s318 + $0x98] sm:$0xff] %v357
                  %v359 = vld [vmem:[%s317 + $0x140] sm:$0xff]
                  %360 = vst [vmem:[%s318 + $0xa0] sm:$0xff] %v359
                  %v361 = vld [vmem:[%s317 + $0x150] sm:$0xff]
                  %362 = vst [vmem:[%s318 + $0xa8] sm:$0xff] %v361
                  %v363 = vld [vmem:[%s317 + $0x160] sm:$0xff]
                  %364 = vst [vmem:[%s318 + $0xb0] sm:$0xff] %v363
                  %v365 = vld [vmem:[%s317 + $0x170] sm:$0xff]
                  %366 = vst [vmem:[%s318 + $0xb8] sm:$0xff] %v365
                  %v367 = vld [vmem:[%s317 + $0x180] sm:$0xff]
                  %368 = vst [vmem:[%s318 + $0xc0] sm:$0xff] %v367
                  %v369 = vld [vmem:[%s317 + $0x190] sm:$0xff]
                  %370 = vst [vmem:[%s318 + $0xc8] sm:$0xff] %v369
                  %v371 = vld [vmem:[%s317 + $0x1a0] sm:$0xff]
                  %372 = vst [vmem:[%s318 + $0xd0] sm:$0xff] %v371
                  %v373 = vld [vmem:[%s317 + $0x1b0] sm:$0xff]
                  %374 = vst [vmem:[%s318 + $0xd8] sm:$0xff] %v373
                  %v375 = vld [vmem:[%s317 + $0x1c0] sm:$0xff]
                  %376 = vst [vmem:[%s318 + $0xe0] sm:$0xff] %v375
                  %v377 = vld [vmem:[%s317 + $0x1d0] sm:$0xff]
                  %378 = vst [vmem:[%s318 + $0xe8] sm:$0xff] %v377
                  %v379 = vld [vmem:[%s317 + $0x1e0] sm:$0xff]
                  %380 = vst [vmem:[%s318 + $0xf0] sm:$0xff] %v379
                  %v381 = vld [vmem:[%s317 + $0x1f0] sm:$0xff]
                  %382 = vst [vmem:[%s318 + $0xf8] sm:$0xff] %v381
                  %v383 = vld [vmem:[%s317 + $0x200] sm:$0xff]
                  %384 = vst [vmem:[%s318 + $0x100] sm:$0xff] %v383
                  %v385 = vld [vmem:[%s317 + $0x210] sm:$0xff]
                  %386 = vst [vmem:[%s318 + $0x108] sm:$0xff] %v385
                  %v387 = vld [vmem:[%s317 + $0x220] sm:$0xff]
                  %388 = vst [vmem:[%s318 + $0x110] sm:$0xff] %v387
                  %v389 = vld [vmem:[%s317 + $0x230] sm:$0xff]
                  %390 = vst [vmem:[%s318 + $0x118] sm:$0xff] %v389
                  %v391 = vld [vmem:[%s317 + $0x240] sm:$0xff]
                  %392 = vst [vmem:[%s318 + $0x120] sm:$0xff] %v391
                  %v393 = vld [vmem:[%s317 + $0x250] sm:$0xff]
                  %394 = vst [vmem:[%s318 + $0x128] sm:$0xff] %v393
                  %v395 = vld [vmem:[%s317 + $0x260] sm:$0xff]
                  %396 = vst [vmem:[%s318 + $0x130] sm:$0xff] %v395
                  %v397 = vld [vmem:[%s317 + $0x270] sm:$0xff]
                  %398 = vst [vmem:[%s318 + $0x138] sm:$0xff] %v397
                  %v399 = vld [vmem:[%s317 + $0x280] sm:$0xff]
                  %400 = vst [vmem:[%s318 + $0x140] sm:$0xff] %v399
                  %v401 = vld [vmem:[%s317 + $0x290] sm:$0xff]
                  %402 = vst [vmem:[%s318 + $0x148] sm:$0xff] %v401
                  %v403 = vld [vmem:[%s317 + $0x2a0] sm:$0xff]
                  %404 = vst [vmem:[%s318 + $0x150] sm:$0xff] %v403
                  %v405 = vld [vmem:[%s317 + $0x2b0] sm:$0xff]
                  %406 = vst [vmem:[%s318 + $0x158] sm:$0xff] %v405
                  %v407 = vld [vmem:[%s317 + $0x2c0] sm:$0xff]
                  %408 = vst [vmem:[%s318 + $0x160] sm:$0xff] %v407
                  %v409 = vld [vmem:[%s317 + $0x2d0] sm:$0xff]
                  %410 = vst [vmem:[%s318 + $0x168] sm:$0xff] %v409
                  %v411 = vld [vmem:[%s317 + $0x2e0] sm:$0xff]
                  %412 = vst [vmem:[%s318 + $0x170] sm:$0xff] %v411
                  %v413 = vld [vmem:[%s317 + $0x2f0] sm:$0xff]
                  %414 = vst [vmem:[%s318 + $0x178] sm:$0xff] %v413
                  %v415 = vld [vmem:[%s317 + $0x300] sm:$0xff]
                  %416 = vst [vmem:[%s318 + $0x180] sm:$0xff] %v415
                  %v417 = vld [vmem:[%s317 + $0x310] sm:$0xff]
                  %418 = vst [vmem:[%s318 + $0x188] sm:$0xff] %v417
                  %v419 = vld [vmem:[%s317 + $0x320] sm:$0xff]
                  %420 = vst [vmem:[%s318 + $0x190] sm:$0xff] %v419
                  %v421 = vld [vmem:[%s317 + $0x330] sm:$0xff]
                  %422 = vst [vmem:[%s318 + $0x198] sm:$0xff] %v421
                  %v423 = vld [vmem:[%s317 + $0x340] sm:$0xff]
                  %424 = vst [vmem:[%s318 + $0x1a0] sm:$0xff] %v423
                  %v425 = vld [vmem:[%s317 + $0x350] sm:$0xff]
                  %426 = vst [vmem:[%s318 + $0x1a8] sm:$0xff] %v425
                  %v427 = vld [vmem:[%s317 + $0x360] sm:$0xff]
                  %428 = vst [vmem:[%s318 + $0x1b0] sm:$0xff] %v427
                  %v429 = vld [vmem:[%s317 + $0x370] sm:$0xff]
                  %430 = vst [vmem:[%s318 + $0x1b8] sm:$0xff] %v429
                  %v431 = vld [vmem:[%s317 + $0x380] sm:$0xff]
                  %432 = vst [vmem:[%s318 + $0x1c0] sm:$0xff] %v431
                  %v433 = vld [vmem:[%s317 + $0x390] sm:$0xff]
                  %434 = vst [vmem:[%s318 + $0x1c8] sm:$0xff] %v433
                  %v435 = vld [vmem:[%s317 + $0x3a0] sm:$0xff]
                  %436 = vst [vmem:[%s318 + $0x1d0] sm:$0xff] %v435
                  %v437 = vld [vmem:[%s317 + $0x3b0] sm:$0xff]
                  %438 = vst [vmem:[%s318 + $0x1d8] sm:$0xff] %v437
                  %v439 = vld [vmem:[%s317 + $0x3c0] sm:$0xff]
                  %440 = vst [vmem:[%s318 + $0x1e0] sm:$0xff] %v439
                  %v441 = vld [vmem:[%s317 + $0x3d0] sm:$0xff]
                  %442 = vst [vmem:[%s318 + $0x1e8] sm:$0xff] %v441
                  %v443 = vld [vmem:[%s317 + $0x3e0] sm:$0xff]
                  %444 = vst [vmem:[%s318 + $0x1f0] sm:$0xff] %v443
                  %v445 = vld [vmem:[%s317 + $0x3f0] sm:$0xff]
                  %446 = vst [vmem:[%s318 + $0x1f8] sm:$0xff] %v445
                $region56: #{upblock_forward.6} parent=50 // loop_footer
                  %s316 = sadd.s32 1, %s312
                $region57: #{upblock_forward.6} parent=50 // loop_footer_branch
                  %311 = sbr.rel target = $region53
                $region58: #{upblock_forward.6} parent=50 // loop_exit
                  _
              $region51: #{upblock_forward.6} parent=35 // pred_fallthru
                _
              // Predicated region
              $region59: #{upblock_forward.6} parent=35 // pred_check
                _
              $region60: #{upblock_forward.6} parent=35 // pred_check_branch
                %448 = sbr.rel target = $region62
              $region61: #{upblock_forward.6} parent=35 // pred_region
                _
              $region62: #{upblock_forward.6} parent=35 // pred_fallthru
                _
            $region36: #{upblock_forward.6} parent=31 // pred_fallthru
              _
            // Predicated region
            $region37: #{upblock_forward.6} parent=31 // pred_check
              _
            $region38: #{upblock_forward.6} parent=31 // pred_check_branch
              %171 = sbr.rel target = $region40
            $region39: #{upblock_forward.6} parent=31 // pred_region
              loop: start=0, step=1, limit=1
              $region41: #{upblock_forward.6} parent=39 // loop_pre_header
                _
              $region42: #{upblock_forward.6} parent=39 // loop_header
                %s174 = sphi 0, %s178
                %p175 = scmp.ge.s32.totalorder %s174, 1
                %s179 = sphi %s165, %s165
                %s180 = sphi %s162, %s162
              $region43: #{upblock_forward.6} parent=39 // loop_header_branch
                %177 = sbr.rel (%p175) target = $region47
              $region44: #{upblock_forward.6} parent=39 // loop_body
                %v181 = vld [vmem:[%s179] sm:$0xff]
                %182 = vst [vmem:[%s180] sm:$0xff] %v181
                %v183 = vld [vmem:[%s179 + $0x10] sm:$0xff]
                %184 = vst [vmem:[%s180 + $0x8] sm:$0xff] %v183
                %v185 = vld [vmem:[%s179 + $0x20] sm:$0xff]
                %186 = vst [vmem:[%s180 + $0x10] sm:$0xff] %v185
                %v187 = vld [vmem:[%s179 + $0x30] sm:$0xff]
                %188 = vst [vmem:[%s180 + $0x18] sm:$0xff] %v187
                %v189 = vld [vmem:[%s179 + $0x40] sm:$0xff]
                %190 = vst [vmem:[%s180 + $0x20] sm:$0xff] %v189
                %v191 = vld [vmem:[%s179 + $0x50] sm:$0xff]
                %192 = vst [vmem:[%s180 + $0x28] sm:$0xff] %v191
                %v193 = vld [vmem:[%s179 + $0x60] sm:$0xff]
                %194 = vst [vmem:[%s180 + $0x30] sm:$0xff] %v193
                %v195 = vld [vmem:[%s179 + $0x70] sm:$0xff]
                %196 = vst [vmem:[%s180 + $0x38] sm:$0xff] %v195
                %v197 = vld [vmem:[%s179 + $0x80] sm:$0xff]
                %198 = vst [vmem:[%s180 + $0x40] sm:$0xff] %v197
                %v199 = vld [vmem:[%s179 + $0x90] sm:$0xff]
                %200 = vst [vmem:[%s180 + $0x48] sm:$0xff] %v199
                %v201 = vld [vmem:[%s179 + $0xa0] sm:$0xff]
                %202 = vst [vmem:[%s180 + $0x50] sm:$0xff] %v201
                %v203 = vld [vmem:[%s179 + $0xb0] sm:$0xff]
                %204 = vst [vmem:[%s180 + $0x58] sm:$0xff] %v203
                %v205 = vld [vmem:[%s179 + $0xc0] sm:$0xff]
                %206 = vst [vmem:[%s180 + $0x60] sm:$0xff] %v205
                %v207 = vld [vmem:[%s179 + $0xd0] sm:$0xff]
                %208 = vst [vmem:[%s180 + $0x68] sm:$0xff] %v207
                %v209 = vld [vmem:[%s179 + $0xe0] sm:$0xff]
                %210 = vst [vmem:[%s180 + $0x70] sm:$0xff] %v209
                %v211 = vld [vmem:[%s179 + $0xf0] sm:$0xff]
                %212 = vst [vmem:[%s180 + $0x78] sm:$0xff] %v211
                %v213 = vld [vmem:[%s179 + $0x100] sm:$0xff]
                %214 = vst [vmem:[%s180 + $0x80] sm:$0xff] %v213
                %v215 = vld [vmem:[%s179 + $0x110] sm:$0xff]
                %216 = vst [vmem:[%s180 + $0x88] sm:$0xff] %v215
                %v217 = vld [vmem:[%s179 + $0x120] sm:$0xff]
                %218 = vst [vmem:[%s180 + $0x90] sm:$0xff] %v217
                %v219 = vld [vmem:[%s179 + $0x130] sm:$0xff]
                %220 = vst [vmem:[%s180 + $0x98] sm:$0xff] %v219
                %v221 = vld [vmem:[%s179 + $0x140] sm:$0xff]
                %222 = vst [vmem:[%s180 + $0xa0] sm:$0xff] %v221
                %v223 = vld [vmem:[%s179 + $0x150] sm:$0xff]
                %224 = vst [vmem:[%s180 + $0xa8] sm:$0xff] %v223
                %v225 = vld [vmem:[%s179 + $0x160] sm:$0xff]
                %226 = vst [vmem:[%s180 + $0xb0] sm:$0xff] %v225
                %v227 = vld [vmem:[%s179 + $0x170] sm:$0xff]
                %228 = vst [vmem:[%s180 + $0xb8] sm:$0xff] %v227
                %v229 = vld [vmem:[%s179 + $0x180] sm:$0xff]
                %230 = vst [vmem:[%s180 + $0xc0] sm:$0xff] %v229
                %v231 = vld [vmem:[%s179 + $0x190] sm:$0xff]
                %232 = vst [vmem:[%s180 + $0xc8] sm:$0xff] %v231
                %v233 = vld [vmem:[%s179 + $0x1a0] sm:$0xff]
                %234 = vst [vmem:[%s180 + $0xd0] sm:$0xff] %v233
                %v235 = vld [vmem:[%s179 + $0x1b0] sm:$0xff]
                %236 = vst [vmem:[%s180 + $0xd8] sm:$0xff] %v235
                %v237 = vld [vmem:[%s179 + $0x1c0] sm:$0xff]
                %238 = vst [vmem:[%s180 + $0xe0] sm:$0xff] %v237
                %v239 = vld [vmem:[%s179 + $0x1d0] sm:$0xff]
                %240 = vst [vmem:[%s180 + $0xe8] sm:$0xff] %v239
                %v241 = vld [vmem:[%s179 + $0x1e0] sm:$0xff]
                %242 = vst [vmem:[%s180 + $0xf0] sm:$0xff] %v241
                %v243 = vld [vmem:[%s179 + $0x1f0] sm:$0xff]
                %244 = vst [vmem:[%s180 + $0xf8] sm:$0xff] %v243
                %v245 = vld [vmem:[%s179 + $0x200] sm:$0xff]
                %246 = vst [vmem:[%s180 + $0x100] sm:$0xff] %v245
                %v247 = vld [vmem:[%s179 + $0x210] sm:$0xff]
                %248 = vst [vmem:[%s180 + $0x108] sm:$0xff] %v247
                %v249 = vld [vmem:[%s179 + $0x220] sm:$0xff]
                %250 = vst [vmem:[%s180 + $0x110] sm:$0xff] %v249
                %v251 = vld [vmem:[%s179 + $0x230] sm:$0xff]
                %252 = vst [vmem:[%s180 + $0x118] sm:$0xff] %v251
                %v253 = vld [vmem:[%s179 + $0x240] sm:$0xff]
                %254 = vst [vmem:[%s180 + $0x120] sm:$0xff] %v253
                %v255 = vld [vmem:[%s179 + $0x250] sm:$0xff]
                %256 = vst [vmem:[%s180 + $0x128] sm:$0xff] %v255
                %v257 = vld [vmem:[%s179 + $0x260] sm:$0xff]
                %258 = vst [vmem:[%s180 + $0x130] sm:$0xff] %v257
                %v259 = vld [vmem:[%s179 + $0x270] sm:$0xff]
                %260 = vst [vmem:[%s180 + $0x138] sm:$0xff] %v259
                %v261 = vld [vmem:[%s179 + $0x280] sm:$0xff]
                %262 = vst [vmem:[%s180 + $0x140] sm:$0xff] %v261
                %v263 = vld [vmem:[%s179 + $0x290] sm:$0xff]
                %264 = vst [vmem:[%s180 + $0x148] sm:$0xff] %v263
                %v265 = vld [vmem:[%s179 + $0x2a0] sm:$0xff]
                %266 = vst [vmem:[%s180 + $0x150] sm:$0xff] %v265
                %v267 = vld [vmem:[%s179 + $0x2b0] sm:$0xff]
                %268 = vst [vmem:[%s180 + $0x158] sm:$0xff] %v267
                %v269 = vld [vmem:[%s179 + $0x2c0] sm:$0xff]
                %270 = vst [vmem:[%s180 + $0x160] sm:$0xff] %v269
                %v271 = vld [vmem:[%s179 + $0x2d0] sm:$0xff]
                %272 = vst [vmem:[%s180 + $0x168] sm:$0xff] %v271
                %v273 = vld [vmem:[%s179 + $0x2e0] sm:$0xff]
                %274 = vst [vmem:[%s180 + $0x170] sm:$0xff] %v273
                %v275 = vld [vmem:[%s179 + $0x2f0] sm:$0xff]
                %276 = vst [vmem:[%s180 + $0x178] sm:$0xff] %v275
                %v277 = vld [vmem:[%s179 + $0x300] sm:$0xff]
                %278 = vst [vmem:[%s180 + $0x180] sm:$0xff] %v277
                %v279 = vld [vmem:[%s179 + $0x310] sm:$0xff]
                %280 = vst [vmem:[%s180 + $0x188] sm:$0xff] %v279
                %v281 = vld [vmem:[%s179 + $0x320] sm:$0xff]
                %282 = vst [vmem:[%s180 + $0x190] sm:$0xff] %v281
                %v283 = vld [vmem:[%s179 + $0x330] sm:$0xff]
                %284 = vst [vmem:[%s180 + $0x198] sm:$0xff] %v283
                %v285 = vld [vmem:[%s179 + $0x340] sm:$0xff]
                %286 = vst [vmem:[%s180 + $0x1a0] sm:$0xff] %v285
                %v287 = vld [vmem:[%s179 + $0x350] sm:$0xff]
                %288 = vst [vmem:[%s180 + $0x1a8] sm:$0xff] %v287
                %v289 = vld [vmem:[%s179 + $0x360] sm:$0xff]
                %290 = vst [vmem:[%s180 + $0x1b0] sm:$0xff] %v289
                %v291 = vld [vmem:[%s179 + $0x370] sm:$0xff]
                %292 = vst [vmem:[%s180 + $0x1b8] sm:$0xff] %v291
                %v293 = vld [vmem:[%s179 + $0x380] sm:$0xff]
                %294 = vst [vmem:[%s180 + $0x1c0] sm:$0xff] %v293
                %v295 = vld [vmem:[%s179 + $0x390] sm:$0xff]
                %296 = vst [vmem:[%s180 + $0x1c8] sm:$0xff] %v295
                %v297 = vld [vmem:[%s179 + $0x3a0] sm:$0xff]
                %298 = vst [vmem:[%s180 + $0x1d0] sm:$0xff] %v297
                %v299 = vld [vmem:[%s179 + $0x3b0] sm:$0xff]
                %300 = vst [vmem:[%s180 + $0x1d8] sm:$0xff] %v299
                %v301 = vld [vmem:[%s179 + $0x3c0] sm:$0xff]
                %302 = vst [vmem:[%s180 + $0x1e0] sm:$0xff] %v301
                %v303 = vld [vmem:[%s179 + $0x3d0] sm:$0xff]
                %304 = vst [vmem:[%s180 + $0x1e8] sm:$0xff] %v303
                %v305 = vld [vmem:[%s179 + $0x3e0] sm:$0xff]
                %306 = vst [vmem:[%s180 + $0x1f0] sm:$0xff] %v305
                %v307 = vld [vmem:[%s179 + $0x3f0] sm:$0xff]
                %308 = vst [vmem:[%s180 + $0x1f8] sm:$0xff] %v307
              $region45: #{upblock_forward.6} parent=39 // loop_footer
                %s178 = sadd.s32 1, %s174
              $region46: #{upblock_forward.6} parent=39 // loop_footer_branch
                %173 = sbr.rel target = $region42
              $region47: #{upblock_forward.6} parent=39 // loop_exit
                _
            $region40: #{upblock_forward.6} parent=31 // pred_fallthru
              _
          $region32: #{upblock_forward.6} parent=27 // pred_fallthru
            _
          %449 = vnop
        $region28: #{upblock_forward.6} parent=23 // pred_fallthru
          _
        // Predicated region
        $region63: #{upblock_forward.6} parent=23 // pred_check
          %p450 = pneg %p99
        $region64: #{upblock_forward.6} parent=23 // pred_check_branch
          %452 = sbr.rel (%p450) target = $region66
        $region65: #{upblock_forward.6} parent=23 // pred_region
          %s453 = smul.u32 2, %s11
          %p454 = scmp.lt.s32.totalorder %s453, 3
          %s455 = scalar_select %p454, %s453, 3
          %s456 = smul.addr %s455, 8
          %s457 = scalar_lea.vmem %s3, %s456
          %s458 = smul.u32 2, %s11
        $region66: #{upblock_forward.6} parent=23 // pred_fallthru
          _
      $region24: #{upblock_forward.6} parent=5 // pred_fallthru
        _
      %p459 = scmp.le.s32.totalorder 1, %s11
      %p460 = scmp.lt.s32.totalorder %s11, 3
      %p461 = pnand %p459, %p460
      %p462 = pneg %p461
      // Predicated region
      $region67: #{upblock_forward.6} parent=5 // pred_check
        _
      $region68: #{upblock_forward.6} parent=5 // pred_check_branch
        %464 = sbr.rel (%p461) target = $region70
      $region69: #{upblock_forward.6} parent=5 // pred_region
        %s465 = ssub.s32 %s11, 1
        %s466 = sand.u32 %s45, 1
        %s467 = sand.u32 %s45, 1
        %s468 = smul.addr %s467, 512
        %s469 = scalar_lea.vmem [#allocation3], %s468
        // Predicated region
        $region71: #{upblock_forward.6} parent=69 // pred_check
          %p470 = pneg %p58
        $region72: #{upblock_forward.6} parent=69 // pred_check_branch
          %472 = sbr.rel (%p470) target = $region74
        $region73: #{upblock_forward.6} parent=69 // pred_region
          _
        $region74: #{upblock_forward.6} parent=69 // pred_fallthru
          _
        %p473 = pneg %p32
        %p474 = pneg %p29
        %s475 = sand.u32 %s45, 1
        %s476 = sand.u32 %s45, 1
        %s477 = smul.addr %s476, 512
        %s478 = scalar_lea.vmem [#allocation3], %s477
        %p479 = pneg %p58
        %p480 = pneg %p55
        %p481 = pneg %p79
        %p482 = pneg %p76
        %s483 = smul.u32 2, %s16
        %p484 = scmp.lt.s32.totalorder %s483, 3
        %s485 = scalar_select %p484, %s483, 3
        %s486 = smul.addr %s485, 8
        %s487 = scalar_lea.vmem %s3, %s486
        %p488 = pneg %p105
        %p489 = pneg %p102
        %p490 = pneg %p131
        %p491 = pneg %p128
        %s492 = smul.u32 2, %s16
        %p493 = scmp.lt.s32.totalorder %s492, 3
        %s494 = scalar_select %p493, %s492, 3
        %s495 = smul.addr %s494, 8
        %s496 = scalar_lea.vmem %s4, %s495
        %s497 = smul.u32 2, %s16
        %s498 = smul.u32 2, %s16
        %p499 = scmp.lt.s32.totalorder %s498, 3
        %s500 = scalar_select %p499, %s498, 3
        %s501 = smul.addr %s500, 8
        %s502 = scalar_lea.vmem %s3, %s501
        %s503 = smul.u32 2, %s16
        %s504 = smul.u32 2, %s16
        %p505 = scmp.lt.s32.totalorder %s504, 3
        %s506 = scalar_select %p505, %s504, 3
        %s507 = smul.addr %s506, 8
        %s508 = scalar_lea.vmem %s4, %s507
        %s509 = smul.u32 2, %s16
        %v510 = vld [vmem:[%s0] sm:$0xff]
        %v511 = vld [vmem:[%s0 + $0x8] sm:$0xff]
        %v512 = vld [vmem:[%s469] sm:$0xff]
        %v513 = vld [vmem:[%s469 + $0x8] sm:$0xff]
        %v514 = vld [vmem:[%s469 + $0x10] sm:$0xff]
        %v515 = vld [vmem:[%s469 + $0x18] sm:$0xff]
        %v516 = vld [vmem:[%s469 + $0x20] sm:$0xff]
        %v517 = vld [vmem:[%s469 + $0x28] sm:$0xff]
        %v518 = vld [vmem:[%s469 + $0x30] sm:$0xff]
        %v519 = vld [vmem:[%s469 + $0x38] sm:$0xff]
        %v520 = vld [vmem:[%s469 + $0x40] sm:$0xff]
        %v521 = vld [vmem:[%s469 + $0x48] sm:$0xff]
        %v522 = vld [vmem:[%s469 + $0x50] sm:$0xff]
        %v523 = vld [vmem:[%s469 + $0x58] sm:$0xff]
        %v524 = vld [vmem:[%s469 + $0x60] sm:$0xff]
        %v525 = vld [vmem:[%s469 + $0x68] sm:$0xff]
        %v526 = vld [vmem:[%s469 + $0x70] sm:$0xff]
        %v527 = vld [vmem:[%s469 + $0x78] sm:$0xff]
        %v528 = vld [vmem:[%s469 + $0x80] sm:$0xff]
        %v529 = vld [vmem:[%s469 + $0x88] sm:$0xff]
        %v530 = vld [vmem:[%s469 + $0x90] sm:$0xff]
        %v531 = vld [vmem:[%s469 + $0x98] sm:$0xff]
        %v532 = vld [vmem:[%s469 + $0xa0] sm:$0xff]
        %v533 = vld [vmem:[%s469 + $0xa8] sm:$0xff]
        %v534 = vld [vmem:[%s469 + $0xb0] sm:$0xff]
        %v535 = vld [vmem:[%s469 + $0xb8] sm:$0xff]
        %v536 = vld [vmem:[%s469 + $0xc0] sm:$0xff]
        %v537 = vld [vmem:[%s469 + $0xc8] sm:$0xff]
        %v538 = vld [vmem:[%s469 + $0xd0] sm:$0xff]
        %v539 = vld [vmem:[%s469 + $0xd8] sm:$0xff]
        %v540 = vld [vmem:[%s469 + $0xe0] sm:$0xff]
        %v541 = vld [vmem:[%s469 + $0xe8] sm:$0xff]
        %v542 = vld [vmem:[%s469 + $0xf0] sm:$0xff]
        %v543 = vld [vmem:[%s469 + $0xf8] sm:$0xff]
        %v544 = vld [vmem:[%s469 + $0x100] sm:$0xff]
        %v545 = vld [vmem:[%s469 + $0x108] sm:$0xff]
        %v546 = vld [vmem:[%s469 + $0x110] sm:$0xff]
        %v547 = vld [vmem:[%s469 + $0x118] sm:$0xff]
        %v548 = vld [vmem:[%s469 + $0x120] sm:$0xff]
        %v549 = vld [vmem:[%s469 + $0x128] sm:$0xff]
        %v550 = vld [vmem:[%s469 + $0x130] sm:$0xff]
        %v551 = vld [vmem:[%s469 + $0x138] sm:$0xff]
        %v552 = vld [vmem:[%s469 + $0x140] sm:$0xff]
        %v553 = vld [vmem:[%s469 + $0x148] sm:$0xff]
        %v554 = vld [vmem:[%s469 + $0x150] sm:$0xff]
        %v555 = vld [vmem:[%s469 + $0x158] sm:$0xff]
        %v556 = vld [vmem:[%s469 + $0x160] sm:$0xff]
        %v557 = vld [vmem:[%s469 + $0x168] sm:$0xff]
        %v558 = vld [vmem:[%s469 + $0x170] sm:$0xff]
        %v559 = vld [vmem:[%s469 + $0x178] sm:$0xff]
        %v560 = vld [vmem:[%s469 + $0x180] sm:$0xff]
        %v561 = vld [vmem:[%s469 + $0x188] sm:$0xff]
        %v562 = vld [vmem:[%s469 + $0x190] sm:$0xff]
        %v563 = vld [vmem:[%s469 + $0x198] sm:$0xff]
        %v564 = vld [vmem:[%s469 + $0x1a0] sm:$0xff]
        %v565 = vld [vmem:[%s469 + $0x1a8] sm:$0xff]
        %v566 = vld [vmem:[%s469 + $0x1b0] sm:$0xff]
        %v567 = vld [vmem:[%s469 + $0x1b8] sm:$0xff]
        %v568 = vld [vmem:[%s469 + $0x1c0] sm:$0xff]
        %v569 = vld [vmem:[%s469 + $0x1c8] sm:$0xff]
        %v570 = vld [vmem:[%s469 + $0x1d0] sm:$0xff]
        %v571 = vld [vmem:[%s469 + $0x1d8] sm:$0xff]
        %v572 = vld [vmem:[%s469 + $0x1e0] sm:$0xff]
        %v573 = vld [vmem:[%s469 + $0x1e8] sm:$0xff]
        %v574 = vld [vmem:[%s469 + $0x1f0] sm:$0xff]
        %v575 = vld [vmem:[%s469 + $0x1f8] sm:$0xff]
        %v578 = vunpack.c.l.b16 %v510
        %v579 = vunpack.c.h.b16 %v510
        %v580 = vunpack.c.l.b16 %v511
        %v581 = vunpack.c.h.b16 %v511
        %v582 = vpack.c.b16 %v578, %v578
        %v583 = vpack.c.b16 %v579, %v579
        %v584 = vpack.c.b16 %v580, %v580
        %v585 = vpack.c.b16 %v581, %v581
        %v654 = vunpack.c.l.b16 %v512
        %v655 = vunpack.c.h.b16 %v512
        %v656 = vunpack.c.l.b16 %v513
        %v657 = vunpack.c.h.b16 %v513
        %v658 = vunpack.c.l.b16 %v514
        %v659 = vunpack.c.h.b16 %v514
        %v660 = vunpack.c.l.b16 %v515
        %v661 = vunpack.c.h.b16 %v515
        %v662 = vunpack.c.l.b16 %v516
        %v663 = vunpack.c.h.b16 %v516
        %v664 = vunpack.c.l.b16 %v517
        %v665 = vunpack.c.h.b16 %v517
        %v666 = vunpack.c.l.b16 %v518
        %v667 = vunpack.c.h.b16 %v518
        %v668 = vunpack.c.l.b16 %v519
        %v669 = vunpack.c.h.b16 %v519
        %v670 = vunpack.c.l.b16 %v520
        %v671 = vunpack.c.h.b16 %v520
        %v672 = vunpack.c.l.b16 %v521
        %v673 = vunpack.c.h.b16 %v521
        %v674 = vunpack.c.l.b16 %v522
        %v675 = vunpack.c.h.b16 %v522
        %v676 = vunpack.c.l.b16 %v523
        %v677 = vunpack.c.h.b16 %v523
        %v678 = vunpack.c.l.b16 %v524
        %v679 = vunpack.c.h.b16 %v524
        %v680 = vunpack.c.l.b16 %v525
        %v681 = vunpack.c.h.b16 %v525
        %v682 = vunpack.c.l.b16 %v526
        %v683 = vunpack.c.h.b16 %v526
        %v684 = vunpack.c.l.b16 %v527
        %v685 = vunpack.c.h.b16 %v527
        %v686 = vunpack.c.l.b16 %v528
        %v687 = vunpack.c.h.b16 %v528
        %v688 = vunpack.c.l.b16 %v529
        %v689 = vunpack.c.h.b16 %v529
        %v690 = vunpack.c.l.b16 %v530
        %v691 = vunpack.c.h.b16 %v530
        %v692 = vunpack.c.l.b16 %v531
        %v693 = vunpack.c.h.b16 %v531
        %v694 = vunpack.c.l.b16 %v532
        %v695 = vunpack.c.h.b16 %v532
        %v696 = vunpack.c.l.b16 %v533
        %v697 = vunpack.c.h.b16 %v533
        %v698 = vunpack.c.l.b16 %v534
        %v699 = vunpack.c.h.b16 %v534
        %v700 = vunpack.c.l.b16 %v535
        %v701 = vunpack.c.h.b16 %v535
        %v702 = vunpack.c.l.b16 %v536
        %v703 = vunpack.c.h.b16 %v536
        %v704 = vunpack.c.l.b16 %v537
        %v705 = vunpack.c.h.b16 %v537
        %v706 = vunpack.c.l.b16 %v538
        %v707 = vunpack.c.h.b16 %v538
        %v708 = vunpack.c.l.b16 %v539
        %v709 = vunpack.c.h.b16 %v539
        %v710 = vunpack.c.l.b16 %v540
        %v711 = vunpack.c.h.b16 %v540
        %v712 = vunpack.c.l.b16 %v541
        %v713 = vunpack.c.h.b16 %v541
        %v714 = vunpack.c.l.b16 %v542
        %v715 = vunpack.c.h.b16 %v542
        %v716 = vunpack.c.l.b16 %v543
        %v717 = vunpack.c.h.b16 %v543
        %v718 = vunpack.c.l.b16 %v544
        %v719 = vunpack.c.h.b16 %v544
        %v720 = vunpack.c.l.b16 %v545
        %v721 = vunpack.c.h.b16 %v545
        %v722 = vunpack.c.l.b16 %v546
        %v723 = vunpack.c.h.b16 %v546
        %v724 = vunpack.c.l.b16 %v547
        %v725 = vunpack.c.h.b16 %v547
        %v726 = vunpack.c.l.b16 %v548
        %v727 = vunpack.c.h.b16 %v548
        %v728 = vunpack.c.l.b16 %v549
        %v729 = vunpack.c.h.b16 %v549
        %v730 = vunpack.c.l.b16 %v550
        %v731 = vunpack.c.h.b16 %v550
        %v732 = vunpack.c.l.b16 %v551
        %v733 = vunpack.c.h.b16 %v551
        %v734 = vunpack.c.l.b16 %v552
        %v735 = vunpack.c.h.b16 %v552
        %v736 = vunpack.c.l.b16 %v553
        %v737 = vunpack.c.h.b16 %v553
        %v738 = vunpack.c.l.b16 %v554
        %v739 = vunpack.c.h.b16 %v554
        %v740 = vunpack.c.l.b16 %v555
        %v741 = vunpack.c.h.b16 %v555
        %v742 = vunpack.c.l.b16 %v556
        %v743 = vunpack.c.h.b16 %v556
        %v744 = vunpack.c.l.b16 %v557
        %v745 = vunpack.c.h.b16 %v557
        %v746 = vunpack.c.l.b16 %v558
        %v747 = vunpack.c.h.b16 %v558
        %v748 = vunpack.c.l.b16 %v559
        %v749 = vunpack.c.h.b16 %v559
        %v750 = vunpack.c.l.b16 %v560
        %v751 = vunpack.c.h.b16 %v560
        %v752 = vunpack.c.l.b16 %v561
        %v753 = vunpack.c.h.b16 %v561
        %v754 = vunpack.c.l.b16 %v562
        %v755 = vunpack.c.h.b16 %v562
        %v756 = vunpack.c.l.b16 %v563
        %v757 = vunpack.c.h.b16 %v563
        %v758 = vunpack.c.l.b16 %v564
        %v759 = vunpack.c.h.b16 %v564
        %v760 = vunpack.c.l.b16 %v565
        %v761 = vunpack.c.h.b16 %v565
        %v762 = vunpack.c.l.b16 %v566
        %v763 = vunpack.c.h.b16 %v566
        %v764 = vunpack.c.l.b16 %v567
        %v765 = vunpack.c.h.b16 %v567
        %v766 = vunpack.c.l.b16 %v568
        %v767 = vunpack.c.h.b16 %v568
        %v768 = vunpack.c.l.b16 %v569
        %v769 = vunpack.c.h.b16 %v569
        %v770 = vunpack.c.l.b16 %v570
        %v771 = vunpack.c.h.b16 %v570
        %v772 = vunpack.c.l.b16 %v571
        %v773 = vunpack.c.h.b16 %v571
        %v774 = vunpack.c.l.b16 %v572
        %v775 = vunpack.c.h.b16 %v572
        %v776 = vunpack.c.l.b16 %v573
        %v777 = vunpack.c.h.b16 %v573
        %v778 = vunpack.c.l.b16 %v574
        %v779 = vunpack.c.h.b16 %v574
        %v780 = vunpack.c.l.b16 %v575
        %v781 = vunpack.c.h.b16 %v575
        %v782 = vpack.c.b16 %v656, %v654
        %v783 = vpack.c.b16 %v657, %v655
        %v784 = vpack.c.b16 %v660, %v658
        %v785 = vpack.c.b16 %v661, %v659
        %v786 = vpack.c.b16 %v664, %v662
        %v787 = vpack.c.b16 %v665, %v663
        %v788 = vpack.c.b16 %v668, %v666
        %v789 = vpack.c.b16 %v669, %v667
        %v790 = vpack.c.b16 %v672, %v670
        %v791 = vpack.c.b16 %v673, %v671
        %v792 = vpack.c.b16 %v676, %v674
        %v793 = vpack.c.b16 %v677, %v675
        %v794 = vpack.c.b16 %v680, %v678
        %v795 = vpack.c.b16 %v681, %v679
        %v796 = vpack.c.b16 %v684, %v682
        %v797 = vpack.c.b16 %v685, %v683
        %v798 = vpack.c.b16 %v688, %v686
        %v799 = vpack.c.b16 %v689, %v687
        %v800 = vpack.c.b16 %v692, %v690
        %v801 = vpack.c.b16 %v693, %v691
        %v802 = vpack.c.b16 %v696, %v694
        %v803 = vpack.c.b16 %v697, %v695
        %v804 = vpack.c.b16 %v700, %v698
        %v805 = vpack.c.b16 %v701, %v699
        %v806 = vpack.c.b16 %v704, %v702
        %v807 = vpack.c.b16 %v705, %v703
        %v808 = vpack.c.b16 %v708, %v706
        %v809 = vpack.c.b16 %v709, %v707
        %v810 = vpack.c.b16 %v712, %v710
        %v811 = vpack.c.b16 %v713, %v711
        %v812 = vpack.c.b16 %v716, %v714
        %v813 = vpack.c.b16 %v717, %v715
        %v814 = vpack.c.b16 %v720, %v718
        %v815 = vpack.c.b16 %v721, %v719
        %v816 = vpack.c.b16 %v724, %v722
        %v817 = vpack.c.b16 %v725, %v723
        %v818 = vpack.c.b16 %v728, %v726
        %v819 = vpack.c.b16 %v729, %v727
        %v820 = vpack.c.b16 %v732, %v730
        %v821 = vpack.c.b16 %v733, %v731
        %v822 = vpack.c.b16 %v736, %v734
        %v823 = vpack.c.b16 %v737, %v735
        %v824 = vpack.c.b16 %v740, %v738
        %v825 = vpack.c.b16 %v741, %v739
        %v826 = vpack.c.b16 %v744, %v742
        %v827 = vpack.c.b16 %v745, %v743
        %v828 = vpack.c.b16 %v748, %v746
        %v829 = vpack.c.b16 %v749, %v747
        %v830 = vpack.c.b16 %v752, %v750
        %v831 = vpack.c.b16 %v753, %v751
        %v832 = vpack.c.b16 %v756, %v754
        %v833 = vpack.c.b16 %v757, %v755
        %v834 = vpack.c.b16 %v760, %v758
        %v835 = vpack.c.b16 %v761, %v759
        %v836 = vpack.c.b16 %v764, %v762
        %v837 = vpack.c.b16 %v765, %v763
        %v838 = vpack.c.b16 %v768, %v766
        %v839 = vpack.c.b16 %v769, %v767
        %v840 = vpack.c.b16 %v772, %v770
        %v841 = vpack.c.b16 %v773, %v771
        %v842 = vpack.c.b16 %v776, %v774
        %v843 = vpack.c.b16 %v777, %v775
        %v844 = vpack.c.b16 %v780, %v778
        %v845 = vpack.c.b16 %v781, %v779
        %910 = vmatprep.subr.bf16.mxu0 %v783
        %911 = vmatpush1.bf16.msra.mxu0 %v782
        %912 = vmatprep.subr.bf16.mxu0 %v785
        %913 = vmatpush1.bf16.msra.mxu0 %v784
        %914 = vmatprep.subr.bf16.mxu0 %v787
        %915 = vmatpush1.bf16.msra.mxu0 %v786
        %916 = vmatprep.subr.bf16.mxu0 %v789
        %917 = vmatpush1.bf16.msra.mxu0 %v788
        %918 = vmatprep.subr.bf16.mxu0 %v791
        %919 = vmatpush1.bf16.msra.mxu0 %v790
        %920 = vmatprep.subr.bf16.mxu0 %v793
        %921 = vmatpush1.bf16.msra.mxu0 %v792
        %922 = vmatprep.subr.bf16.mxu0 %v795
        %923 = vmatpush1.bf16.msra.mxu0 %v794
        %924 = vmatprep.subr.bf16.mxu0 %v797
        %925 = vmatpush1.bf16.msra.mxu0 %v796
        %926 = vmatprep.subr.bf16.mxu0 %v799
        %927 = vmatpush1.bf16.msra.mxu0 %v798
        %928 = vmatprep.subr.bf16.mxu0 %v801
        %929 = vmatpush1.bf16.msra.mxu0 %v800
        %930 = vmatprep.subr.bf16.mxu0 %v803
        %931 = vmatpush1.bf16.msra.mxu0 %v802
        %932 = vmatprep.subr.bf16.mxu0 %v805
        %933 = vmatpush1.bf16.msra.mxu0 %v804
        %934 = vmatprep.subr.bf16.mxu0 %v807
        %935 = vmatpush1.bf16.msra.mxu0 %v806
        %936 = vmatprep.subr.bf16.mxu0 %v809
        %937 = vmatpush1.bf16.msra.mxu0 %v808
        %938 = vmatprep.subr.bf16.mxu0 %v811
        %939 = vmatpush1.bf16.msra.mxu0 %v810
        %940 = vmatprep.subr.bf16.mxu0 %v813
        %941 = vmatpush1.bf16.msra.mxu0 %v812
        %942 = vmatprep.mubr.bf16.mxu0 %v583
        %943 = vmatmul.mubr.bf16.gmra.mrb[0].mxu0 %v582
        %v944 = vpop.f32.mrb[0].mxu0
        %v945 = vadd.f32 0.0, %v944
        %v946 = vpop.f32.mrb[0].mxu0
        %v947 = vadd.f32 0.0, %v946
        %v948 = vpop.f32.mrb[0].mxu0
        %v949 = vpop.f32.mrb[0].mxu0
        %950 = vdwg.mxu0
        %951 = vmatprep.subr.bf16.mxu0 %v815
        %952 = vmatpush1.bf16.msra.mxu0 %v814
        %953 = vmatprep.subr.bf16.mxu0 %v817
        %954 = vmatpush1.bf16.msra.mxu0 %v816
        %955 = vmatprep.subr.bf16.mxu0 %v819
        %956 = vmatpush1.bf16.msra.mxu0 %v818
        %957 = vmatprep.subr.bf16.mxu0 %v821
        %958 = vmatpush1.bf16.msra.mxu0 %v820
        %959 = vmatprep.subr.bf16.mxu0 %v823
        %960 = vmatpush1.bf16.msra.mxu0 %v822
        %961 = vmatprep.subr.bf16.mxu0 %v825
        %962 = vmatpush1.bf16.msra.mxu0 %v824
        %963 = vmatprep.subr.bf16.mxu0 %v827
        %964 = vmatpush1.bf16.msra.mxu0 %v826
        %965 = vmatprep.subr.bf16.mxu0 %v829
        %966 = vmatpush1.bf16.msra.mxu0 %v828
        %967 = vmatprep.subr.bf16.mxu0 %v831
        %968 = vmatpush1.bf16.msra.mxu0 %v830
        %969 = vmatprep.subr.bf16.mxu0 %v833
        %970 = vmatpush1.bf16.msra.mxu0 %v832
        %971 = vmatprep.subr.bf16.mxu0 %v835
        %972 = vmatpush1.bf16.msra.mxu0 %v834
        %973 = vmatprep.subr.bf16.mxu0 %v837
        %974 = vmatpush1.bf16.msra.mxu0 %v836
        %975 = vmatprep.subr.bf16.mxu0 %v839
        %976 = vmatpush1.bf16.msra.mxu0 %v838
        %977 = vmatprep.subr.bf16.mxu0 %v841
        %978 = vmatpush1.bf16.msra.mxu0 %v840
        %979 = vmatprep.subr.bf16.mxu0 %v843
        %980 = vmatpush1.bf16.msra.mxu0 %v842
        %981 = vmatprep.subr.bf16.mxu0 %v845
        %982 = vmatpush1.bf16.msra.mxu0 %v844
        %983 = vmatprep.mubr.bf16.mxu0 %v585
        %984 = vmatmul.mubr.bf16.gmra.mrb[0].mxu0 %v584
        %v985 = vpop.f32.mrb[0].mxu0
        %v986 = vadd.f32 %v945, %v985
        %v987 = vpop.f32.mrb[0].mxu0
        %v988 = vadd.f32 %v947, %v987
        %v989 = vpop.f32.mrb[0].mxu0
        %v990 = vpop.f32.mrb[0].mxu0
        %991 = vdwg.mxu0
        %s992 = sld [smem:[#allocation2]]
        %vm993 = vcmp.ge.f32.partialorder %v986, 0.0
        %vm994 = vcmp.ge.f32.partialorder %v988, 0.0
        %v995 = vstv %s992
        %v996 = vmul.f32 %v995, %v986
        %v997 = vmul.f32 %v995, %v988
        %v998 = vsel %vm993, %v986, %v996
        %v999 = vsel %vm994, %v988, %v997
        %v1000 = vld [vmem:[%s502] sm:$0xff]
        %v1001 = vld [vmem:[%s502 + $0x8] sm:$0xff]
        %v1002 = vsub.f32 %v998, %v1000
        %v1003 = vsub.f32 %v999, %v1001
        %1004 = vst [vmem:[%s508] sm:$0xff] %v1002
        %1005 = vst [vmem:[%s508 + $0x8] sm:$0xff] %v1003
        %s1006 = smul.u32 2, %s16
        %p1007 = scmp.lt.s32.totalorder %s1006, 3
        %s1008 = scalar_select %p1007, %s1006, 3
        %s1009 = smul.addr %s1008, 8
        %s1010 = scalar_lea.vmem %s4, %s1009
        // Predicated region
        $region75: #{upblock_forward.6} parent=69 // pred_check
          %p1011 = pneg %p128
        $region76: #{upblock_forward.6} parent=69 // pred_check_branch
          %1013 = sbr.rel (%p1011) target = $region78
        $region77: #{upblock_forward.6} parent=69 // pred_region
          %s1014 = smul.u32 2, %s16
        $region78: #{upblock_forward.6} parent=69 // pred_fallthru
          _
      $region70: #{upblock_forward.6} parent=5 // pred_fallthru
        _
      %p1015 = scmp.le.s32.totalorder 2, %s11
      // Predicated region
      $region79: #{upblock_forward.6} parent=5 // pred_check
        %p1016 = pneg %p1015
      $region80: #{upblock_forward.6} parent=5 // pred_check_branch
        %1018 = sbr.rel (%p1016) target = $region82
      $region81: #{upblock_forward.6} parent=5 // pred_region
        %s1019 = ssub.s32 %s11, 2
        // Predicated region
        $region83: #{upblock_forward.6} parent=81 // pred_check
          %p1020 = pneg %p134
        $region84: #{upblock_forward.6} parent=81 // pred_check_branch
          %1022 = sbr.rel (%p1020) target = $region86
        $region85: #{upblock_forward.6} parent=81 // pred_region
          %s1023 = smul.u32 2, %s17
          %p1024 = scmp.lt.s32.totalorder %s1023, 3
          %s1025 = scalar_select %p1024, %s1023, 3
          %s1026 = smul.addr %s1025, 8
          %s1027 = scalar_lea.vmem %s4, %s1026
        $region86: #{upblock_forward.6} parent=81 // pred_fallthru
          _
      $region82: #{upblock_forward.6} parent=5 // pred_fallthru
        _
    $region6: #{upblock_forward.6} parent=1 // loop_footer
      %s15 = sadd.s32 1, %s11
    $region7: #{upblock_forward.6} parent=1 // loop_footer_branch
      %10 = sbr.rel target = $region3
    $region8: #{upblock_forward.6} parent=1 // loop_exit
      _

// kernel: upblock_forward.7
$region0: #{upblock_forward.7}
  #allocation0 [shape = 'u32[]', space=smem, size = 0x4, offset = 0x4, fixed_abs, tag = 'smem constant byte address 0x4 - core index']
  #allocation1 [shape = 'u32[144,128]{1,0:T(1,128)}', space=vmem, size = 0x12000, scoped, tag = 'internal scratch']
  #allocation2 [shape = 'f32[1]{0:T(128)S(6)}', space=smem, size = 0x200, scoped, tag = 'scoped memory for upblock_forward.7']
  %s0 = inlined_call_operand.vmem [shape: bf16[640,32], index: 0, kind: input, shape index: {}]
  %s1 = inlined_call_operand.vmem [shape: bf16[32,128], index: 1, kind: input, shape index: {}]
  %s2 = inlined_call_operand.<no memory space> [shape: f32[1], index: 2, kind: input, shape index: {}]
  %s3 = inlined_call_operand.vmem [shape: f32[640,128], index: 3, kind: input, shape index: {}]
  %s4 = inlined_call_operand.vmem [shape: f32[640,128], index: 4, kind: output, shape index: {}]
  %s5 = sld [smem:[#allocation0]]
  $region49: #{upblock_forward.7} parent=0
    _
  %s7 = ssub.s32 1, %s5
  %s8 = scalar_select 0, %s7, %s5
  %9 = sst [smem:[#allocation2]] %s2
  loop: start=0, step=1, limit=7
  $region2: #{upblock_forward.7} parent=0 // loop_pre_header
    _
  $region3: #{upblock_forward.7} parent=0 // loop_header
    %s11 = sphi 0, %s15
    %p12 = scmp.ge.s32.totalorder %s11, 7
    %s21 = sphi 0, %s23
    %s24 = sphi 0, %s21
    %s25 = sphi 0, %s24
    %s41 = sphi 0, %s25
    %s45 = sphi 0, %s45
    %s47 = sphi 0, %s45
    %s48 = sphi 0, %s47
    %s62 = sphi 0, %s48
    %s66 = sphi 0, %s66
    %s68 = sphi 0, %s66
    %s69 = sphi 0, %s68
    %s83 = sphi 0, %s69
    %s89 = sphi 0, %s91
    %s92 = sphi 0, %s89
    %s93 = sphi 0, %s92
    %s109 = sphi 0, %s93
    %s115 = sphi 0, %s117
    %s118 = sphi 0, %s115
    %s119 = sphi 0, %s118
    %s135 = sphi 0, %s119
  $region4: #{upblock_forward.7} parent=0 // loop_header_branch
    %14 = sbr.rel (%p12) target = $region8
  $region5: #{upblock_forward.7} parent=0 // loop_body
    %s16 = ssub.s32 %s11, 1
    %s17 = ssub.s32 %s11, 2
    %s18 = sadd.s32 %s11, 1
    %s19 = ssub.s32 %s11, %s18
    %p20 = scmp.eq.s32.totalorder %s19, 0
    %s22 = sadd.s32 %s21, 1
    %s23 = scalar_select %p20, %s21, %s22
    %p26 = pneg %p20
    %p27 = scmp.eq.s32.totalorder %s11, 4
    %p28 = por %p26, %p27
    %p29 = scmp.ne.s32.totalorder %s21, %s24
    %p30 = scmp.eq.s32.totalorder %s11, 0
    %p31 = por %p29, %p30
    %p32 = scmp.ne.s32.totalorder %s21, %s24
    %p33 = scmp.eq.s32.totalorder %s16, 4
    %p34 = por %p32, %p33
    %p35 = scmp.ne.s32.totalorder %s24, %s25
    %p36 = scmp.eq.s32.totalorder %s16, 0
    %p37 = por %p35, %p36
    %p38 = scmp.ne.s32.totalorder %s24, %s25
    %p39 = scmp.eq.s32.totalorder %s17, 4
    %p40 = por %p38, %p39
    %p42 = scmp.ne.s32.totalorder %s25, %s41
    %p43 = scmp.eq.s32.totalorder %s17, 0
    %p44 = por %p42, %p43
    %s46 = sadd.s32 %s45, 1
    %p49 = scmp.eq.s32.totalorder %s11, 4
    %p50 = scmp.ne.s32.totalorder %s45, %s47
    %p51 = scmp.eq.s32.totalorder %s11, 0
    %p52 = por %p50, %p51
    %p53 = scmp.ne.s32.totalorder %s45, %s47
    %p54 = scmp.eq.s32.totalorder %s16, 4
    %p55 = por %p53, %p54
    %p56 = scmp.ne.s32.totalorder %s47, %s48
    %p57 = scmp.eq.s32.totalorder %s16, 0
    %p58 = por %p56, %p57
    %p59 = scmp.ne.s32.totalorder %s47, %s48
    %p60 = scmp.eq.s32.totalorder %s17, 4
    %p61 = por %p59, %p60
    %p63 = scmp.ne.s32.totalorder %s48, %s62
    %p64 = scmp.eq.s32.totalorder %s17, 0
    %p65 = por %p63, %p64
    %s67 = sadd.s32 %s66, 1
    %p70 = scmp.eq.s32.totalorder %s11, 4
    %p71 = scmp.ne.s32.totalorder %s66, %s68
    %p72 = scmp.eq.s32.totalorder %s11, 0
    %p73 = por %p71, %p72
    %p74 = scmp.ne.s32.totalorder %s66, %s68
    %p75 = scmp.eq.s32.totalorder %s16, 4
    %p76 = por %p74, %p75
    %p77 = scmp.ne.s32.totalorder %s68, %s69
    %p78 = scmp.eq.s32.totalorder %s16, 0
    %p79 = por %p77, %p78
    %p80 = scmp.ne.s32.totalorder %s68, %s69
    %p81 = scmp.eq.s32.totalorder %s17, 4
    %p82 = por %p80, %p81
    %p84 = scmp.ne.s32.totalorder %s69, %s83
    %p85 = scmp.eq.s32.totalorder %s17, 0
    %p86 = por %p84, %p85
    %s87 = ssub.s32 %s11, %s18
    %p88 = scmp.eq.s32.totalorder %s87, 0
    %s90 = sadd.s32 %s89, 1
    %s91 = scalar_select %p88, %s89, %s90
    %p94 = pneg %p88
    %p95 = scmp.eq.s32.totalorder %s11, 4
    %p96 = por %p94, %p95
    %p97 = scmp.ne.s32.totalorder %s89, %s92
    %p98 = scmp.eq.s32.totalorder %s11, 0
    %p99 = por %p97, %p98
    %p100 = scmp.ne.s32.totalorder %s89, %s92
    %p101 = scmp.eq.s32.totalorder %s16, 4
    %p102 = por %p100, %p101
    %p103 = scmp.ne.s32.totalorder %s92, %s93
    %p104 = scmp.eq.s32.totalorder %s16, 0
    %p105 = por %p103, %p104
    %p106 = scmp.ne.s32.totalorder %s92, %s93
    %p107 = scmp.eq.s32.totalorder %s17, 4
    %p108 = por %p106, %p107
    %p110 = scmp.ne.s32.totalorder %s93, %s109
    %p111 = scmp.eq.s32.totalorder %s17, 0
    %p112 = por %p110, %p111
    %s113 = ssub.s32 %s11, %s18
    %p114 = scmp.eq.s32.totalorder %s113, 0
    %s116 = sadd.s32 %s115, 1
    %s117 = scalar_select %p114, %s115, %s116
    %p120 = pneg %p114
    %p121 = scmp.eq.s32.totalorder %s11, 4
    %p122 = por %p120, %p121
    %p123 = scmp.ne.s32.totalorder %s115, %s118
    %p124 = scmp.eq.s32.totalorder %s11, 0
    %p125 = por %p123, %p124
    %p126 = scmp.ne.s32.totalorder %s115, %s118
    %p127 = scmp.eq.s32.totalorder %s16, 4
    %p128 = por %p126, %p127
    %p129 = scmp.ne.s32.totalorder %s118, %s119
    %p130 = scmp.eq.s32.totalorder %s16, 0
    %p131 = por %p129, %p130
    %p132 = scmp.ne.s32.totalorder %s118, %s119
    %p133 = scmp.eq.s32.totalorder %s17, 4
    %p134 = por %p132, %p133
    %p136 = scmp.ne.s32.totalorder %s119, %s135
    %p137 = scmp.eq.s32.totalorder %s17, 0
    %p138 = por %p136, %p137
    %p139 = scmp.le.s32.totalorder 1, %s11
    %p140 = scmp.lt.s32.totalorder %s11, 6
    %p141 = pnand %p139, %p140
    %p142 = pneg %p141
    // Predicated region
    $region9: #{upblock_forward.7} parent=5 // pred_check
      _
    $region10: #{upblock_forward.7} parent=5 // pred_check_branch
      %144 = sbr.rel (%p141) target = $region12
    $region11: #{upblock_forward.7} parent=5 // pred_region
      %s145 = ssub.s32 %s11, 1
      // Predicated region
      $region13: #{upblock_forward.7} parent=11 // pred_check
        %p146 = pneg %p58
      $region14: #{upblock_forward.7} parent=11 // pred_check_branch
        %148 = sbr.rel (%p146) target = $region16
      $region15: #{upblock_forward.7} parent=11 // pred_region
        _
      $region16: #{upblock_forward.7} parent=11 // pred_fallthru
        _
      // Predicated region
      $region17: #{upblock_forward.7} parent=11 // pred_check
        %p149 = pneg %p79
      $region18: #{upblock_forward.7} parent=11 // pred_check_branch
        %151 = sbr.rel (%p149) target = $region20
      $region19: #{upblock_forward.7} parent=11 // pred_region
        _
      $region20: #{upblock_forward.7} parent=11 // pred_fallthru
        _
    $region12: #{upblock_forward.7} parent=5 // pred_fallthru
      _
    %p152 = scmp.lt.s32.totalorder %s11, 5
    // Predicated region
    $region21: #{upblock_forward.7} parent=5 // pred_check
      %p153 = pneg %p152
    $region22: #{upblock_forward.7} parent=5 // pred_check_branch
      %155 = sbr.rel (%p153) target = $region24
    $region23: #{upblock_forward.7} parent=5 // pred_region
      // Predicated region
      $region25: #{upblock_forward.7} parent=23 // pred_check
        %p156 = pneg %p31
      $region26: #{upblock_forward.7} parent=23 // pred_check_branch
        %158 = sbr.rel (%p156) target = $region28
      $region27: #{upblock_forward.7} parent=23 // pred_region
        %s159 = smul.u32 16, %s11
        %p160 = scmp.lt.s32.totalorder %s159, 79
        %s161 = scalar_select %p160, %s159, 79
        %s162 = smul.addr %s161, 4
        %s163 = scalar_lea.vmem %s0, %s162
        %s164 = smul.u32 16, %s11
      $region28: #{upblock_forward.7} parent=23 // pred_fallthru
        _
      // Predicated region
      $region29: #{upblock_forward.7} parent=23 // pred_check
        %p165 = pneg %p99
      $region30: #{upblock_forward.7} parent=23 // pred_check_branch
        %167 = sbr.rel (%p165) target = $region32
      $region31: #{upblock_forward.7} parent=23 // pred_region
        %s168 = smul.u32 16, %s11
        %p169 = scmp.lt.s32.totalorder %s168, 79
        %s170 = scalar_select %p169, %s168, 79
        %s171 = smul.addr %s170, 8
        %s172 = scalar_lea.vmem %s3, %s171
        %s173 = smul.u32 16, %s11
      $region32: #{upblock_forward.7} parent=23 // pred_fallthru
        _
    $region24: #{upblock_forward.7} parent=5 // pred_fallthru
      _
    %p174 = scmp.le.s32.totalorder 1, %s11
    %p175 = scmp.lt.s32.totalorder %s11, 6
    %p176 = pnand %p174, %p175
    %p177 = pneg %p176
    // Predicated region
    $region33: #{upblock_forward.7} parent=5 // pred_check
      _
    $region34: #{upblock_forward.7} parent=5 // pred_check_branch
      %179 = sbr.rel (%p176) target = $region36
    $region35: #{upblock_forward.7} parent=5 // pred_region
      %s180 = ssub.s32 %s11, 1
      %s181 = smul.u32 16, %s16
      %p182 = scmp.lt.s32.totalorder %s181, 79
      %s183 = scalar_select %p182, %s181, 79
      %s184 = smul.addr %s183, 4
      %s185 = scalar_lea.vmem %s0, %s184
      %p186 = pneg %p37
      %p187 = pneg %p34
      %p188 = pneg %p58
      %p189 = pneg %p55
      %p190 = pneg %p79
      %p191 = pneg %p76
      %s192 = smul.u32 16, %s16
      %p193 = scmp.lt.s32.totalorder %s192, 79
      %s194 = scalar_select %p193, %s192, 79
      %s195 = smul.addr %s194, 8
      %s196 = scalar_lea.vmem %s3, %s195
      %p197 = pneg %p105
      %p198 = pneg %p102
      %p199 = pneg %p131
      %p200 = pneg %p128
      %s201 = smul.u32 16, %s16
      %p202 = scmp.lt.s32.totalorder %s201, 79
      %s203 = scalar_select %p202, %s201, 79
      %s204 = smul.addr %s203, 8
      %s205 = scalar_lea.vmem %s4, %s204
      %s206 = smul.u32 16, %s16
      %p207 = scmp.lt.s32.totalorder %s206, 79
      %s208 = scalar_select %p207, %s206, 79
      %s209 = smul.addr %s208, 4
      %s210 = scalar_lea.vmem %s0, %s209
      %s211 = smul.u32 16, %s16
      %s212 = smul.u32 16, %s16
      %p213 = scmp.lt.s32.totalorder %s212, 79
      %s214 = scalar_select %p213, %s212, 79
      %s215 = smul.addr %s214, 8
      %s216 = scalar_lea.vmem %s3, %s215
      %s217 = smul.u32 16, %s16
      %s218 = smul.u32 16, %s16
      %p219 = scmp.lt.s32.totalorder %s218, 79
      %s220 = scalar_select %p219, %s218, 79
      %s221 = smul.addr %s220, 8
      %s222 = scalar_lea.vmem %s4, %s221
      %s223 = smul.u32 16, %s16
      %v225 = vld [vmem:[%s210] sm:$0xf]
      %v226 = vld [vmem:[%s210 + $0x4] sm:$0xf]
      %v227 = vld [vmem:[%s210 + $0x8] sm:$0xf]
      %v228 = vld [vmem:[%s210 + $0xc] sm:$0xf]
      %v229 = vld [vmem:[%s210 + $0x10] sm:$0xf]
      %v230 = vld [vmem:[%s210 + $0x14] sm:$0xf]
      %v231 = vld [vmem:[%s210 + $0x18] sm:$0xf]
      %v232 = vld [vmem:[%s210 + $0x1c] sm:$0xf]
      %v233 = vld [vmem:[%s210 + $0x20] sm:$0xf]
      %v234 = vld [vmem:[%s210 + $0x24] sm:$0xf]
      %v235 = vld [vmem:[%s210 + $0x28] sm:$0xf]
      %v236 = vld [vmem:[%s210 + $0x2c] sm:$0xf]
      %v237 = vld [vmem:[%s210 + $0x30] sm:$0xf]
      %v238 = vld [vmem:[%s210 + $0x34] sm:$0xf]
      %v239 = vld [vmem:[%s210 + $0x38] sm:$0xf]
      %v240 = vld [vmem:[%s210 + $0x3c] sm:$0xf]
      %v241 = vld [vmem:[%s1] sm:$0xf]
      %v242 = vld [vmem:[%s1 + $0x4] sm:$0xf]
      %v243 = vld [vmem:[%s1 + $0x8] sm:$0xf]
      %v244 = vld [vmem:[%s1 + $0xc] sm:$0xf]
      %v261 = vunpack.c.l.b16 %v225
      %v262 = vunpack.c.l.b16 %v226
      %v263 = vunpack.c.l.b16 %v227
      %v264 = vunpack.c.l.b16 %v228
      %v265 = vunpack.c.l.b16 %v229
      %v266 = vunpack.c.l.b16 %v230
      %v267 = vunpack.c.l.b16 %v231
      %v268 = vunpack.c.l.b16 %v232
      %v269 = vunpack.c.l.b16 %v233
      %v270 = vunpack.c.l.b16 %v234
      %v271 = vunpack.c.l.b16 %v235
      %v272 = vunpack.c.l.b16 %v236
      %v273 = vunpack.c.l.b16 %v237
      %v274 = vunpack.c.l.b16 %v238
      %v275 = vunpack.c.l.b16 %v239
      %v276 = vunpack.c.l.b16 %v240
      %v277 = vpack.c.b16 %v262, %v261
      %v278 = vpack.c.b16 %v264, %v263
      %v279 = vpack.c.b16 %v266, %v265
      %v280 = vpack.c.b16 %v268, %v267
      %v281 = vpack.c.b16 %v270, %v269
      %v282 = vpack.c.b16 %v272, %v271
      %v283 = vpack.c.b16 %v274, %v273
      %v284 = vpack.c.b16 %v276, %v275
      %v289 = vunpack.c.l.b16 %v241
      %v290 = vunpack.c.l.b16 %v242
      %v291 = vunpack.c.l.b16 %v243
      %v292 = vunpack.c.l.b16 %v244
      %v293 = vpack.c.b16 %v290, %v289
      %v294 = vpack.c.b16 %v292, %v291
      %vm297 = vcmask 261120
      %v299 = vsel %vm297, %v277, 0
      %v302 = vsel %vm297, %v278, 0
      %v305 = vsel %vm297, %v279, 0
      %v308 = vsel %vm297, %v280, 0
      %v311 = vsel %vm297, %v281, 0
      %v314 = vsel %vm297, %v282, 0
      %v317 = vsel %vm297, %v283, 0
      %v320 = vsel %vm297, %v284, 0
      %322 = vmatprep.subr.bf16.mxu0 0
      %323 = vmatpush1.bf16.msra.mxu0 %v293
      %324 = vmatprep.subr.bf16.mxu0 0
      %325 = vmatpush1.bf16.msra.mxu0 %v294
      %326 = vmatprep.subr.bf16.mxu0 0
      %327 = vmatpush1.bf16.msra.mxu0 0
      %328 = vmatprep.subr.bf16.mxu0 0
      %329 = vmatpush1.bf16.msra.mxu0 0
      %330 = vmatprep.subr.bf16.mxu0 0
      %331 = vmatpush1.bf16.msra.mxu0 0
      %332 = vmatprep.subr.bf16.mxu0 0
      %333 = vmatpush1.bf16.msra.mxu0 0
      %334 = vmatprep.subr.bf16.mxu0 0
      %335 = vmatpush1.bf16.msra.mxu0 0
      %336 = vmatprep.subr.bf16.mxu0 0
      %337 = vmatpush1.bf16.msra.mxu0 0
      %338 = vmatprep.subr.bf16.mxu0 0
      %339 = vmatpush1.bf16.msra.mxu0 0
      %340 = vmatprep.subr.bf16.mxu0 0
      %341 = vmatpush1.bf16.msra.mxu0 0
      %342 = vmatprep.subr.bf16.mxu0 0
      %343 = vmatpush1.bf16.msra.mxu0 0
      %344 = vmatprep.subr.bf16.mxu0 0
      %345 = vmatpush1.bf16.msra.mxu0 0
      %346 = vmatprep.subr.bf16.mxu0 0
      %347 = vmatpush1.bf16.msra.mxu0 0
      %348 = vmatprep.subr.bf16.mxu0 0
      %349 = vmatpush1.bf16.msra.mxu0 0
      %350 = vmatprep.subr.bf16.mxu0 0
      %351 = vmatpush1.bf16.msra.mxu0 0
      %352 = vmatprep.subr.bf16.mxu0 0
      %353 = vmatpush1.bf16.msra.mxu0 0
      %354 = vmatprep.mubr.bf16.mxu0 0
      %355 = vmatmul.mubr.bf16.gmra.mrb[0].mxu0 %v299
      %v356 = vpop.f32.mrb[0].mxu0
      %v357 = vadd.f32 0.0, %v356
      %v358 = vpop.f32.mrb[0].mxu0
      %v359 = vpop.f32.mrb[0].mxu0
      %v360 = vadd.f32 0.0, %v359
      %v361 = vpop.f32.mrb[0].mxu0
      %362 = vmatprep.mubr.bf16.mxu0 0
      %363 = vmatmul.mubr.bf16.gmra.mrb[0].mxu0 %v302
      %v364 = vpop.f32.mrb[0].mxu0
      %v365 = vadd.f32 0.0, %v364
      %v366 = vpop.f32.mrb[0].mxu0
      %v367 = vpop.f32.mrb[0].mxu0
      %v368 = vadd.f32 0.0, %v367
      %v369 = vpop.f32.mrb[0].mxu0
      %370 = vmatprep.mubr.bf16.mxu0 0
      %371 = vmatmul.mubr.bf16.gmra.mrb[0].mxu0 %v305
      %v372 = vpop.f32.mrb[0].mxu0
      %v373 = vadd.f32 0.0, %v372
      %v374 = vpop.f32.mrb[0].mxu0
      %v375 = vpop.f32.mrb[0].mxu0
      %v376 = vadd.f32 0.0, %v375
      %v377 = vpop.f32.mrb[0].mxu0
      %378 = vmatprep.mubr.bf16.mxu0 0
      %379 = vmatmul.mubr.bf16.gmra.mrb[0].mxu0 %v308
      %v380 = vpop.f32.mrb[0].mxu0
      %v381 = vadd.f32 0.0, %v380
      %v382 = vpop.f32.mrb[0].mxu0
      %v383 = vpop.f32.mrb[0].mxu0
      %v384 = vadd.f32 0.0, %v383
      %v385 = vpop.f32.mrb[0].mxu0
      %386 = vmatprep.mubr.bf16.mxu0 0
      %387 = vmatmul.mubr.bf16.gmra.mrb[0].mxu0 %v311
      %v388 = vpop.f32.mrb[0].mxu0
      %v389 = vadd.f32 0.0, %v388
      %v390 = vpop.f32.mrb[0].mxu0
      %v391 = vpop.f32.mrb[0].mxu0
      %v392 = vadd.f32 0.0, %v391
      %v393 = vpop.f32.mrb[0].mxu0
      %394 = vmatprep.mubr.bf16.mxu0 0
      %395 = vmatmul.mubr.bf16.gmra.mrb[0].mxu0 %v314
      %v396 = vpop.f32.mrb[0].mxu0
      %v397 = vadd.f32 0.0, %v396
      %v398 = vpop.f32.mrb[0].mxu0
      %v399 = vpop.f32.mrb[0].mxu0
      %v400 = vadd.f32 0.0, %v399
      %v401 = vpop.f32.mrb[0].mxu0
      %402 = vmatprep.mubr.bf16.mxu0 0
      %403 = vmatmul.mubr.bf16.gmra.mrb[0].mxu0 %v317
      %v404 = vpop.f32.mrb[0].mxu0
      %v405 = vadd.f32 0.0, %v404
      %v406 = vpop.f32.mrb[0].mxu0
      %v407 = vpop.f32.mrb[0].mxu0
      %v408 = vadd.f32 0.0, %v407
      %v409 = vpop.f32.mrb[0].mxu0
      %410 = vmatprep.mubr.bf16.mxu0 0
      %411 = vmatmul.mubr.bf16.gmra.mrb[0].mxu0 %v320
      %v412 = vpop.f32.mrb[0].mxu0
      %v413 = vadd.f32 0.0, %v412
      %v414 = vpop.f32.mrb[0].mxu0
      %v415 = vpop.f32.mrb[0].mxu0
      %v416 = vadd.f32 0.0, %v415
      %v417 = vpop.f32.mrb[0].mxu0
      %418 = vdwg.mxu0
      %s419 = sld [smem:[#allocation2]]
      %vm420 = vcmp.ge.f32.partialorder %v357, 0.0
      %vm421 = vcmp.ge.f32.partialorder %v360, 0.0
      %vm422 = vcmp.ge.f32.partialorder %v365, 0.0
      %vm423 = vcmp.ge.f32.partialorder %v368, 0.0
      %vm424 = vcmp.ge.f32.partialorder %v373, 0.0
      %vm425 = vcmp.ge.f32.partialorder %v376, 0.0
      %vm426 = vcmp.ge.f32.partialorder %v381, 0.0
      %vm427 = vcmp.ge.f32.partialorder %v384, 0.0
      %vm428 = vcmp.ge.f32.partialorder %v389, 0.0
      %vm429 = vcmp.ge.f32.partialorder %v392, 0.0
      %vm430 = vcmp.ge.f32.partialorder %v397, 0.0
      %vm431 = vcmp.ge.f32.partialorder %v400, 0.0
      %vm432 = vcmp.ge.f32.partialorder %v405, 0.0
      %vm433 = vcmp.ge.f32.partialorder %v408, 0.0
      %vm434 = vcmp.ge.f32.partialorder %v413, 0.0
      %vm435 = vcmp.ge.f32.partialorder %v416, 0.0
      %v436 = vstv %s419
      %v437 = vmul.f32 %v436, %v357
      %v438 = vmul.f32 %v436, %v360
      %v439 = vmul.f32 %v436, %v365
      %v440 = vmul.f32 %v436, %v368
      %v441 = vmul.f32 %v436, %v373
      %v442 = vmul.f32 %v436, %v376
      %v443 = vmul.f32 %v436, %v381
      %v444 = vmul.f32 %v436, %v384
      %v445 = vmul.f32 %v436, %v389
      %v446 = vmul.f32 %v436, %v392
      %v447 = vmul.f32 %v436, %v397
      %v448 = vmul.f32 %v436, %v400
      %v449 = vmul.f32 %v436, %v405
      %v450 = vmul.f32 %v436, %v408
      %v451 = vmul.f32 %v436, %v413
      %v452 = vmul.f32 %v436, %v416
      %v453 = vsel %vm420, %v357, %v437
      %v454 = vsel %vm421, %v360, %v438
      %v455 = vsel %vm422, %v365, %v439
      %v456 = vsel %vm423, %v368, %v440
      %v457 = vsel %vm424, %v373, %v441
      %v458 = vsel %vm425, %v376, %v442
      %v459 = vsel %vm426, %v381, %v443
      %v460 = vsel %vm427, %v384, %v444
      %v461 = vsel %vm428, %v389, %v445
      %v462 = vsel %vm429, %v392, %v446
      %v463 = vsel %vm430, %v397, %v447
      %v464 = vsel %vm431, %v400, %v448
      %v465 = vsel %vm432, %v405, %v449
      %v466 = vsel %vm433, %v408, %v450
      %v467 = vsel %vm434, %v413, %v451
      %v468 = vsel %vm435, %v416, %v452
      %v469 = vld [vmem:[%s216] sm:$0xff]
      %v470 = vld [vmem:[%s216 + $0x8] sm:$0xff]
      %v471 = vld [vmem:[%s216 + $0x10] sm:$0xff]
      %v472 = vld [vmem:[%s216 + $0x18] sm:$0xff]
      %v473 = vld [vmem:[%s216 + $0x20] sm:$0xff]
      %v474 = vld [vmem:[%s216 + $0x28] sm:$0xff]
      %v475 = vld [vmem:[%s216 + $0x30] sm:$0xff]
      %v476 = vld [vmem:[%s216 + $0x38] sm:$0xff]
      %v477 = vld [vmem:[%s216 + $0x40] sm:$0xff]
      %v478 = vld [vmem:[%s216 + $0x48] sm:$0xff]
      %v479 = vld [vmem:[%s216 + $0x50] sm:$0xff]
      %v480 = vld [vmem:[%s216 + $0x58] sm:$0xff]
      %v481 = vld [vmem:[%s216 + $0x60] sm:$0xff]
      %v482 = vld [vmem:[%s216 + $0x68] sm:$0xff]
      %v483 = vld [vmem:[%s216 + $0x70] sm:$0xff]
      %v484 = vld [vmem:[%s216 + $0x78] sm:$0xff]
      %v485 = vadd.f32 %v453, %v469
      %v486 = vadd.f32 %v454, %v470
      %v487 = vadd.f32 %v455, %v471
      %v488 = vadd.f32 %v456, %v472
      %v489 = vadd.f32 %v457, %v473
      %v490 = vadd.f32 %v458, %v474
      %v491 = vadd.f32 %v459, %v475
      %v492 = vadd.f32 %v460, %v476
      %v493 = vadd.f32 %v461, %v477
      %v494 = vadd.f32 %v462, %v478
      %v495 = vadd.f32 %v463, %v479
      %v496 = vadd.f32 %v464, %v480
      %v497 = vadd.f32 %v465, %v481
      %v498 = vadd.f32 %v466, %v482
      %v499 = vadd.f32 %v467, %v483
      %v500 = vadd.f32 %v468, %v484
      %501 = vst [vmem:[%s222] sm:$0xff] %v485
      %502 = vst [vmem:[%s222 + $0x8] sm:$0xff] %v486
      %503 = vst [vmem:[%s222 + $0x10] sm:$0xff] %v487
      %504 = vst [vmem:[%s222 + $0x18] sm:$0xff] %v488
      %505 = vst [vmem:[%s222 + $0x20] sm:$0xff] %v489
      %506 = vst [vmem:[%s222 + $0x28] sm:$0xff] %v490
      %507 = vst [vmem:[%s222 + $0x30] sm:$0xff] %v491
      %508 = vst [vmem:[%s222 + $0x38] sm:$0xff] %v492
      %509 = vst [vmem:[%s222 + $0x40] sm:$0xff] %v493
      %510 = vst [vmem:[%s222 + $0x48] sm:$0xff] %v494
      %511 = vst [vmem:[%s222 + $0x50] sm:$0xff] %v495
      %512 = vst [vmem:[%s222 + $0x58] sm:$0xff] %v496
      %513 = vst [vmem:[%s222 + $0x60] sm:$0xff] %v497
      %514 = vst [vmem:[%s222 + $0x68] sm:$0xff] %v498
      %515 = vst [vmem:[%s222 + $0x70] sm:$0xff] %v499
      %516 = vst [vmem:[%s222 + $0x78] sm:$0xff] %v500
      %s517 = smul.u32 16, %s16
      %p518 = scmp.lt.s32.totalorder %s517, 79
      %s519 = scalar_select %p518, %s517, 79
      %s520 = smul.addr %s519, 8
      %s521 = scalar_lea.vmem %s4, %s520
      // Predicated region
      $region37: #{upblock_forward.7} parent=35 // pred_check
        %p522 = pneg %p128
      $region38: #{upblock_forward.7} parent=35 // pred_check_branch
        %524 = sbr.rel (%p522) target = $region40
      $region39: #{upblock_forward.7} parent=35 // pred_region
        %s525 = smul.u32 16, %s16
      $region40: #{upblock_forward.7} parent=35 // pred_fallthru
        _
    $region36: #{upblock_forward.7} parent=5 // pred_fallthru
      _
    %p526 = scmp.le.s32.totalorder 2, %s11
    // Predicated region
    $region41: #{upblock_forward.7} parent=5 // pred_check
      %p527 = pneg %p526
    $region42: #{upblock_forward.7} parent=5 // pred_check_branch
      %529 = sbr.rel (%p527) target = $region44
    $region43: #{upblock_forward.7} parent=5 // pred_region
      %s530 = ssub.s32 %s11, 2
      // Predicated region
      $region45: #{upblock_forward.7} parent=43 // pred_check
        %p531 = pneg %p134
      $region46: #{upblock_forward.7} parent=43 // pred_check_branch
        %533 = sbr.rel (%p531) target = $region48
      $region47: #{upblock_forward.7} parent=43 // pred_region
        %s534 = smul.u32 16, %s17
        %p535 = scmp.lt.s32.totalorder %s534, 79
        %s536 = scalar_select %p535, %s534, 79
        %s537 = smul.addr %s536, 8
        %s538 = scalar_lea.vmem %s4, %s537
      $region48: #{upblock_forward.7} parent=43 // pred_fallthru
        _
    $region44: #{upblock_forward.7} parent=5 // pred_fallthru
      _
  $region6: #{upblock_forward.7} parent=0 // loop_footer
    %s15 = sadd.s32 1, %s11
  $region7: #{upblock_forward.7} parent=0 // loop_footer_branch
    %10 = sbr.rel target = $region3
  $region8: #{upblock_forward.7} parent=0 // loop_exit
    _

</llo_original>
